<compile_context>
chip_gen: v5e
topology: v5e:2x2
jax: 0.10.0
libtpu: 0.0.40
codegen_flags: <defaults>
</compile_context>

<pallas_src>
import jax
import jax.numpy as jnp
import numpy as np
from jax import lax
from jax.experimental import pallas as pl
from jax.experimental.pallas import tpu as pltpu


def actor_kernel(xproj_ref, whh0_ref, w1_ref, b1_ref, wfc_ref, bfc_ref, out_ref):
    T, Bb, G = xproj_ref.shape          # G = 4H
    H = G // 4

    # Hoist weight loads, bias broadcast and gate mask out of the unrolled loop
    # (JAX does not CSE broadcast_in_dim).
    whh0 = whh0_ref[...]                                     # [H, 4H]
    w1 = w1_ref[...]                                         # [2H, 4H] = [Wih1; Whh1]
    b1 = jnp.broadcast_to(b1_ref[...], (Bb, G))              # [Bb, 4H]
    lane = lax.broadcasted_iota(jnp.int32, (Bb, G), 1)
    g_lanes = (lane >= 2 * H) & (lane < 3 * H)               # tanh lanes ("g" gate)

    def activate(gates):
        # 2 full-width EUP pushes (sigmoid + tanh over all 4H lanes) instead of
        # 4 per-gate pushes; then static lane slices. PyTorch order: i, f, g, o.
        acts = jnp.where(g_lanes, jnp.tanh(gates), jax.nn.sigmoid(gates))
        return (acts[:, 0:H], acts[:, H:2 * H],
                acts[:, 2 * H:3 * H], acts[:, 3 * H:4 * H])

    def step(t, carry):
        h0, c0, h1, c1 = carry
        # Layer 0: x@Wih0 + biases precomputed (xproj); only the h-recurrence dot
        # remains on the serial critical path.
        g0 = xproj_ref[t] + jnp.dot(h0, whh0, preferred_element_type=jnp.float32)
        i0, f0, gg0, o0 = activate(g0)
        c0 = f0 * c0 + i0 * gg0
        h0 = o0 * jnp.tanh(c0)
        # Layer 1: single fused dot of [h0 | h1] against stacked [Wih1; Whh1].
        g1 = jnp.dot(jnp.concatenate([h0, h1], axis=1), w1,
                     preferred_element_type=jnp.float32) + b1
        i1, f1, gg1, o1 = activate(g1)
        c1 = f1 * c1 + i1 * gg1
        h1 = o1 * jnp.tanh(c1)
        return h0, c0, h1, c1

    zeros = jnp.zeros((Bb, H), jnp.float32)
    _, _, h1, _ = lax.fori_loop(0, T, step, (zeros, zeros, zeros, zeros),
                                unroll=True)

    # TODO(synk): nn.LSTM inter-layer dropout (train-mode only, p=0.5) is not
    # applied; this reproduces eval/inference semantics.
    ff = jnp.maximum(h1, 0.0)                                # ReLU(h_n[layer 1])
    logits = (jnp.dot(ff, wfc_ref[...], preferred_element_type=jnp.float32)
              + bfc_ref[...])                                # [Bb, 3]
    m = jnp.max(logits, axis=1, keepdims=True)               # softmax(dim=1)
    e = jnp.exp(logits - m)
    out_ref[...] = e / jnp.sum(e, axis=1, keepdims=True)


def actor_net_forward(x, p):
    """x: [B, T, D] (batch_first, like the PyTorch module). Returns [B, 3]."""
    B, T, D = x.shape
    H = p["w_hh0"].shape[1]
    G = 4 * H

    # Hoisted layer-0 input projection for ALL timesteps, fused with the
    # batch_first -> time-major transpose (one dot_general, no separate HBM
    # transpose round-trip), with the layer-0 biases folded in.  -> [T, B, 4H].
    xproj = jnp.einsum("btd,dg->tbg", x, p["w_ih0"].T,
                       precision=jax.lax.Precision.HIGHEST)
    xproj = xproj + (p["b_ih0"] + p["b_hh0"])[None, None, :]

    whh0 = p["w_hh0"].T                                      # [H, 4H]
    w1 = jnp.concatenate([p["w_ih1"].T, p["w_hh1"].T], axis=0)   # [2H, 4H]
    b1 = (p["b_ih1"] + p["b_hh1"]).reshape(1, G)
    wfc = p["w_fc"].T                                        # [H, 3]
    bfc = p["b_fc"].reshape(1, 3)

    # Parallel batch grid: >=8-row tiles so v7x's 2nd TensorCore gets independent
    # work; single program for small B.  (For large T, chunk time via a second
    # "arbitrary" grid axis / double-buffered DMA instead of keeping xproj resident.)
    Bb = 8 if (B > 8 and B % 8 == 0) else B
    grid = (B // Bb,)

    return pl.pallas_call(
        actor_kernel,
        out_shape=jax.ShapeDtypeStruct((B, 3), jnp.float32),
        grid_spec=pltpu.PrefetchScalarGridSpec(
            num_scalar_prefetch=0,
            grid=grid,
            in_specs=[
                pl.BlockSpec((T, Bb, G), lambda b: (0, b, 0)),    # xproj
                pl.BlockSpec((H, G), lambda b: (0, 0)),           # Whh0^T
                pl.BlockSpec((2 * H, G), lambda b: (0, 0)),       # [Wih1; Whh1]^T
                pl.BlockSpec((1, G), lambda b: (0, 0)),           # b1
                pl.BlockSpec((H, 3), lambda b: (0, 0)),           # Wfc^T
                pl.BlockSpec((1, 3), lambda b: (0, 0)),           # bfc
            ],
            out_specs=pl.BlockSpec((Bb, 3), lambda b: (b, 0)),
        ),
        compiler_params=pltpu.CompilerParams(
            dimension_semantics=("parallel",),
        ),
    )(xproj, whh0, w1, b1, wfc, bfc)


def init_params(key, input_dim, hidden_dim):
    """Deterministic init matching PyTorch's shapes (U(-1/sqrt(H), 1/sqrt(H)))."""
    bound = 1.0 / np.sqrt(hidden_dim)
    keys = jax.random.split(key, 10)

    def u(k_i, shape):
        return jax.random.uniform(k_i, shape, jnp.float32, -bound, bound)

    return dict(
        w_ih0=u(keys[0], (4 * hidden_dim, input_dim)),
        w_hh0=u(keys[1], (4 * hidden_dim, hidden_dim)),
        b_ih0=u(keys[2], (4 * hidden_dim,)),
        b_hh0=u(keys[3], (4 * hidden_dim,)),
        w_ih1=u(keys[4], (4 * hidden_dim, hidden_dim)),
        w_hh1=u(keys[5], (4 * hidden_dim, hidden_dim)),
        b_ih1=u(keys[6], (4 * hidden_dim,)),
        b_hh1=u(keys[7], (4 * hidden_dim,)),
        w_fc=u(keys[8], (3, hidden_dim)),
        b_fc=u(keys[9], (3,)),
    )


def actor_net_reference(x, p):
    """Pure-JAX reference mirroring torch.nn.LSTM (eval) + Linear + Softmax."""
    B, T, _ = x.shape
    H = p["w_hh0"].shape[1]

    def cell(x_t, h, c, wih, whh, bih, bhh):
        gates = x_t @ wih.T + h @ whh.T + bih + bhh
        i, f, g, o = jnp.split(gates, 4, axis=1)
        i, f, o = jax.nn.sigmoid(i), jax.nn.sigmoid(f), jax.nn.sigmoid(o)
        g = jnp.tanh(g)
        c = f * c + i * g
        h = o * jnp.tanh(c)
        return h, c

    h0 = c0 = h1 = c1 = jnp.zeros((B, H), jnp.float32)
    for t in range(T):
        h0, c0 = cell(x[:, t, :], h0, c0, p["w_ih0"], p["w_hh0"], p["b_ih0"], p["b_hh0"])
        h1, c1 = cell(h0, h1, c1, p["w_ih1"], p["w_hh1"], p["b_ih1"], p["b_hh1"])
    ff = jnp.maximum(h1, 0.0)
    logits = ff @ p["w_fc"].T + p["b_fc"]
    return jax.nn.softmax(logits, axis=1)


if __name__ == "__main__":
    # Small shapes consistent with the module (input_dim, hidden_dim, seq_len scaled down).
    batch, seq_len, input_dim, hidden_dim = 4, 8, 8, 32

    key = jax.random.PRNGKey(0)
    k_x, k_p = jax.random.split(key)
    x = jax.random.normal(k_x, (batch, seq_len, input_dim), jnp.float32)
    params = init_params(k_p, input_dim, hidden_dim)

    out = actor_net_forward(x, params)
    out = jax.block_until_ready(out)

    ref = actor_net_reference(x, params)
    np.testing.assert_allclose(np.asarray(out), np.asarray(ref), rtol=1e-5, atol=1e-5)
    assert out.shape == (batch, 3)
    np.testing.assert_allclose(np.asarray(out).sum(axis=1), np.ones(batch), rtol=1e-5)

    print("KERNEL_OK")
</pallas_src>

<mosaic_0001>
module attributes {stable_mosaic.version = 11 : i64} {
  func.func @actor_kernel(%arg0: i32, %arg1: memref<8x4x128xf32, #tpu.memory_space<vmem>>, %arg2: memref<32x128xf32, #tpu.memory_space<vmem>>, %arg3: memref<64x128xf32, #tpu.memory_space<vmem>>, %arg4: memref<1x128xf32, #tpu.memory_space<vmem>>, %arg5: memref<32x3xf32, #tpu.memory_space<vmem>>, %arg6: memref<1x3xf32, #tpu.memory_space<vmem>>, %arg7: memref<4x3xf32, #tpu.memory_space<vmem>>) attributes {dimension_semantics = [#tpu.dimension_semantics<parallel>], iteration_bounds = array<i64: 1>, scalar_prefetch = 0 : i64, scratch_operands = 0 : i64, tpu.core_type = #tpu.core_type<tc>, window_params = [{transform_indices = @transform_0, window_bounds = array<i64: 8, 4, 128>}, {pipeline_mode = #tpu.pipeline_mode<synchronous>, transform_indices = @transform_1, window_bounds = array<i64: 32, 128>}, {pipeline_mode = #tpu.pipeline_mode<synchronous>, transform_indices = @transform_2, window_bounds = array<i64: 64, 128>}, {pipeline_mode = #tpu.pipeline_mode<synchronous>, transform_indices = @transform_3, window_bounds = array<i64: 1, 128>}, {pipeline_mode = #tpu.pipeline_mode<synchronous>, transform_indices = @transform_4, window_bounds = array<i64: 32, 3>}, {pipeline_mode = #tpu.pipeline_mode<synchronous>, transform_indices = @transform_5, window_bounds = array<i64: 1, 3>}, {transform_indices = @transform_6, window_bounds = array<i64: 4, 3>}]} {
    %c0 = arith.constant 0 : index
    %c0_0 = arith.constant 0 : index
    %0 = vector.load %arg2[%c0, %c0_0] : memref<32x128xf32, #tpu.memory_space<vmem>>, vector<32x128xf32>
    %c0_1 = arith.constant 0 : index
    %c0_2 = arith.constant 0 : index
    %1 = vector.load %arg3[%c0_1, %c0_2] : memref<64x128xf32, #tpu.memory_space<vmem>>, vector<64x128xf32>
    %c0_3 = arith.constant 0 : index
    %c0_4 = arith.constant 0 : index
    %2 = vector.load %arg4[%c0_3, %c0_4] : memref<1x128xf32, #tpu.memory_space<vmem>>, vector<1x128xf32>
    %3 = vector.shape_cast %2 : vector<1x128xf32> to vector<1x128xf32>
    %4 = vector.broadcast %3 : vector<1x128xf32> to vector<4x128xf32>
    %5 = tpu.iota {dimensions = array<i32: 1>} : vector<4x128xi32>
    %c64_i32 = arith.constant 64 : i32
    %6 = vector.broadcast %c64_i32 : i32 to vector<4x128xi32>
    %7 = arith.cmpi sge, %5, %6 : vector<4x128xi32>
    %c96_i32 = arith.constant 96 : i32
    %8 = vector.broadcast %c96_i32 : i32 to vector<4x128xi32>
    %9 = arith.cmpi slt, %5, %8 : vector<4x128xi32>
    %10 = arith.andi %7, %9 : vector<4x128xi1>
    %cst = arith.constant 0.000000e+00 : f32
    %11 = vector.broadcast %cst : f32 to vector<4x32xf32>
    %c0_i32 = arith.constant 0 : i32
    %12 = arith.index_cast %c0_i32 : i32 to index
    %c0_5 = arith.constant 0 : index
    %c0_6 = arith.constant 0 : index
    %13 = vector.load %arg1[%12, %c0_5, %c0_6] : memref<8x4x128xf32, #tpu.memory_space<vmem>>, vector<1x4x128xf32>
    %14 = vector.shape_cast %13 : vector<1x4x128xf32> to vector<4x128xf32>
    %cst_7 = arith.constant dense<0.000000e+00> : vector<4x128xf32>
    %15 = tpu.matmul %11, %0, %cst_7 {dimension_numbers = #tpu.dot_dimension_numbers<[1], [0], [0], [1], [0, 0, 1, 1], [], []>} : vector<4x32xf32>, vector<32x128xf32>, vector<4x128xf32> -> vector<4x128xf32>
    %16 = arith.addf %14, %15 : vector<4x128xf32>
    %17 = math.tanh %16 : vector<4x128xf32>
    %18 = arith.negf %16 : vector<4x128xf32>
    %19 = math.exp %18 : vector<4x128xf32>
    %cst_8 = arith.constant 1.000000e+00 : f32
    %20 = vector.broadcast %cst_8 : f32 to vector<4x128xf32>
    %21 = arith.addf %20, %19 : vector<4x128xf32>
    %22 = arith.divf %20, %21 : vector<4x128xf32>
    %23 = arith.select %10, %17, %22 : vector<4x128xi1>, vector<4x128xf32>
    %24 = vector.extract_strided_slice %23 {offsets = [0, 0], sizes = [4, 32], strides = [1, 1]} : vector<4x128xf32> to vector<4x32xf32>
    %25 = vector.extract_strided_slice %23 {offsets = [0, 32], sizes = [4, 32], strides = [1, 1]} : vector<4x128xf32> to vector<4x32xf32>
    %26 = vector.extract_strided_slice %23 {offsets = [0, 64], sizes = [4, 32], strides = [1, 1]} : vector<4x128xf32> to vector<4x32xf32>
    %27 = vector.extract_strided_slice %23 {offsets = [0, 96], sizes = [4, 32], strides = [1, 1]} : vector<4x128xf32> to vector<4x32xf32>
    %28 = arith.mulf %25, %11 : vector<4x32xf32>
    %29 = arith.mulf %24, %26 : vector<4x32xf32>
    %30 = arith.addf %28, %29 : vector<4x32xf32>
    %31 = math.tanh %30 : vector<4x32xf32>
    %32 = arith.mulf %27, %31 : vector<4x32xf32>
    %33 = tpu.concatenate %32, %11 in 1 : vector<4x32xf32>, vector<4x32xf32> -> vector<4x64xf32>
    %cst_9 = arith.constant dense<0.000000e+00> : vector<4x128xf32>
    %34 = tpu.matmul %33, %1, %cst_9 {dimension_numbers = #tpu.dot_dimension_numbers<[1], [0], [0], [1], [0, 0, 1, 1], [], []>} : vector<4x64xf32>, vector<64x128xf32>, vector<4x128xf32> -> vector<4x128xf32>
    %35 = arith.addf %34, %4 : vector<4x128xf32>
    %36 = math.tanh %35 : vector<4x128xf32>
    %37 = arith.negf %35 : vector<4x128xf32>
    %38 = math.exp %37 : vector<4x128xf32>
    %cst_10 = arith.constant 1.000000e+00 : f32
    %39 = vector.broadcast %cst_10 : f32 to vector<4x128xf32>
    %40 = arith.addf %39, %38 : vector<4x128xf32>
    %41 = arith.divf %39, %40 : vector<4x128xf32>
    %42 = arith.select %10, %36, %41 : vector<4x128xi1>, vector<4x128xf32>
    %43 = vector.extract_strided_slice %42 {offsets = [0, 0], sizes = [4, 32], strides = [1, 1]} : vector<4x128xf32> to vector<4x32xf32>
    %44 = vector.extract_strided_slice %42 {offsets = [0, 32], sizes = [4, 32], strides = [1, 1]} : vector<4x128xf32> to vector<4x32xf32>
    %45 = vector.extract_strided_slice %42 {offsets = [0, 64], sizes = [4, 32], strides = [1, 1]} : vector<4x128xf32> to vector<4x32xf32>
    %46 = vector.extract_strided_slice %42 {offsets = [0, 96], sizes = [4, 32], strides = [1, 1]} : vector<4x128xf32> to vector<4x32xf32>
    %47 = arith.mulf %44, %11 : vector<4x32xf32>
    %48 = arith.mulf %43, %45 : vector<4x32xf32>
    %49 = arith.addf %47, %48 : vector<4x32xf32>
    %50 = math.tanh %49 : vector<4x32xf32>
    %51 = arith.mulf %46, %50 : vector<4x32xf32>
    %c1_i32 = arith.constant 1 : i32
    %52 = arith.index_cast %c1_i32 : i32 to index
    %c0_11 = arith.constant 0 : index
    %c0_12 = arith.constant 0 : index
    %53 = vector.load %arg1[%52, %c0_11, %c0_12] : memref<8x4x128xf32, #tpu.memory_space<vmem>>, vector<1x4x128xf32>
    %54 = vector.shape_cast %53 : vector<1x4x128xf32> to vector<4x128xf32>
    %cst_13 = arith.constant dense<0.000000e+00> : vector<4x128xf32>
    %55 = tpu.matmul %32, %0, %cst_13 {dimension_numbers = #tpu.dot_dimension_numbers<[1], [0], [0], [1], [0, 0, 1, 1], [], []>} : vector<4x32xf32>, vector<32x128xf32>, vector<4x128xf32> -> vector<4x128xf32>
    %56 = arith.addf %54, %55 : vector<4x128xf32>
    %57 = math.tanh %56 : vector<4x128xf32>
    %58 = arith.negf %56 : vector<4x128xf32>
    %59 = math.exp %58 : vector<4x128xf32>
    %cst_14 = arith.constant 1.000000e+00 : f32
    %60 = vector.broadcast %cst_14 : f32 to vector<4x128xf32>
    %61 = arith.addf %60, %59 : vector<4x128xf32>
    %62 = arith.divf %60, %61 : vector<4x128xf32>
    %63 = arith.select %10, %57, %62 : vector<4x128xi1>, vector<4x128xf32>
    %64 = vector.extract_strided_slice %63 {offsets = [0, 0], sizes = [4, 32], strides = [1, 1]} : vector<4x128xf32> to vector<4x32xf32>
    %65 = vector.extract_strided_slice %63 {offsets = [0, 32], sizes = [4, 32], strides = [1, 1]} : vector<4x128xf32> to vector<4x32xf32>
    %66 = vector.extract_strided_slice %63 {offsets = [0, 64], sizes = [4, 32], strides = [1, 1]} : vector<4x128xf32> to vector<4x32xf32>
    %67 = vector.extract_strided_slice %63 {offsets = [0, 96], sizes = [4, 32], strides = [1, 1]} : vector<4x128xf32> to vector<4x32xf32>
    %68 = arith.mulf %65, %30 : vector<4x32xf32>
    %69 = arith.mulf %64, %66 : vector<4x32xf32>
    %70 = arith.addf %68, %69 : vector<4x32xf32>
    %71 = math.tanh %70 : vector<4x32xf32>
    %72 = arith.mulf %67, %71 : vector<4x32xf32>
    %73 = tpu.concatenate %72, %51 in 1 : vector<4x32xf32>, vector<4x32xf32> -> vector<4x64xf32>
    %cst_15 = arith.constant dense<0.000000e+00> : vector<4x128xf32>
    %74 = tpu.matmul %73, %1, %cst_15 {dimension_numbers = #tpu.dot_dimension_numbers<[1], [0], [0], [1], [0, 0, 1, 1], [], []>} : vector<4x64xf32>, vector<64x128xf32>, vector<4x128xf32> -> vector<4x128xf32>
    %75 = arith.addf %74, %4 : vector<4x128xf32>
    %76 = math.tanh %75 : vector<4x128xf32>
    %77 = arith.negf %75 : vector<4x128xf32>
    %78 = math.exp %77 : vector<4x128xf32>
    %cst_16 = arith.constant 1.000000e+00 : f32
    %79 = vector.broadcast %cst_16 : f32 to vector<4x128xf32>
    %80 = arith.addf %79, %78 : vector<4x128xf32>
    %81 = arith.divf %79, %80 : vector<4x128xf32>
    %82 = arith.select %10, %76, %81 : vector<4x128xi1>, vector<4x128xf32>
    %83 = vector.extract_strided_slice %82 {offsets = [0, 0], sizes = [4, 32], strides = [1, 1]} : vector<4x128xf32> to vector<4x32xf32>
    %84 = vector.extract_strided_slice %82 {offsets = [0, 32], sizes = [4, 32], strides = [1, 1]} : vector<4x128xf32> to vector<4x32xf32>
    %85 = vector.extract_strided_slice %82 {offsets = [0, 64], sizes = [4, 32], strides = [1, 1]} : vector<4x128xf32> to vector<4x32xf32>
    %86 = vector.extract_strided_slice %82 {offsets = [0, 96], sizes = [4, 32], strides = [1, 1]} : vector<4x128xf32> to vector<4x32xf32>
    %87 = arith.mulf %84, %49 : vector<4x32xf32>
    %88 = arith.mulf %83, %85 : vector<4x32xf32>
    %89 = arith.addf %87, %88 : vector<4x32xf32>
    %90 = math.tanh %89 : vector<4x32xf32>
    %91 = arith.mulf %86, %90 : vector<4x32xf32>
    %c2_i32 = arith.constant 2 : i32
    %92 = arith.index_cast %c2_i32 : i32 to index
    %c0_17 = arith.constant 0 : index
    %c0_18 = arith.constant 0 : index
    %93 = vector.load %arg1[%92, %c0_17, %c0_18] : memref<8x4x128xf32, #tpu.memory_space<vmem>>, vector<1x4x128xf32>
    %94 = vector.shape_cast %93 : vector<1x4x128xf32> to vector<4x128xf32>
    %cst_19 = arith.constant dense<0.000000e+00> : vector<4x128xf32>
    %95 = tpu.matmul %72, %0, %cst_19 {dimension_numbers = #tpu.dot_dimension_numbers<[1], [0], [0], [1], [0, 0, 1, 1], [], []>} : vector<4x32xf32>, vector<32x128xf32>, vector<4x128xf32> -> vector<4x128xf32>
    %96 = arith.addf %94, %95 : vector<4x128xf32>
    %97 = math.tanh %96 : vector<4x128xf32>
    %98 = arith.negf %96 : vector<4x128xf32>
    %99 = math.exp %98 : vector<4x128xf32>
    %cst_20 = arith.constant 1.000000e+00 : f32
    %100 = vector.broadcast %cst_20 : f32 to vector<4x128xf32>
    %101 = arith.addf %100, %99 : vector<4x128xf32>
    %102 = arith.divf %100, %101 : vector<4x128xf32>
    %103 = arith.select %10, %97, %102 : vector<4x128xi1>, vector<4x128xf32>
    %104 = vector.extract_strided_slice %103 {offsets = [0, 0], sizes = [4, 32], strides = [1, 1]} : vector<4x128xf32> to vector<4x32xf32>
    %105 = vector.extract_strided_slice %103 {offsets = [0, 32], sizes = [4, 32], strides = [1, 1]} : vector<4x128xf32> to vector<4x32xf32>
    %106 = vector.extract_strided_slice %103 {offsets = [0, 64], sizes = [4, 32], strides = [1, 1]} : vector<4x128xf32> to vector<4x32xf32>
    %107 = vector.extract_strided_slice %103 {offsets = [0, 96], sizes = [4, 32], strides = [1, 1]} : vector<4x128xf32> to vector<4x32xf32>
    %108 = arith.mulf %105, %70 : vector<4x32xf32>
    %109 = arith.mulf %104, %106 : vector<4x32xf32>
    %110 = arith.addf %108, %109 : vector<4x32xf32>
    %111 = math.tanh %110 : vector<4x32xf32>
    %112 = arith.mulf %107, %111 : vector<4x32xf32>
    %113 = tpu.concatenate %112, %91 in 1 : vector<4x32xf32>, vector<4x32xf32> -> vector<4x64xf32>
    %cst_21 = arith.constant dense<0.000000e+00> : vector<4x128xf32>
    %114 = tpu.matmul %113, %1, %cst_21 {dimension_numbers = #tpu.dot_dimension_numbers<[1], [0], [0], [1], [0, 0, 1, 1], [], []>} : vector<4x64xf32>, vector<64x128xf32>, vector<4x128xf32> -> vector<4x128xf32>
    %115 = arith.addf %114, %4 : vector<4x128xf32>
    %116 = math.tanh %115 : vector<4x128xf32>
    %117 = arith.negf %115 : vector<4x128xf32>
    %118 = math.exp %117 : vector<4x128xf32>
    %cst_22 = arith.constant 1.000000e+00 : f32
    %119 = vector.broadcast %cst_22 : f32 to vector<4x128xf32>
    %120 = arith.addf %119, %118 : vector<4x128xf32>
    %121 = arith.divf %119, %120 : vector<4x128xf32>
    %122 = arith.select %10, %116, %121 : vector<4x128xi1>, vector<4x128xf32>
    %123 = vector.extract_strided_slice %122 {offsets = [0, 0], sizes = [4, 32], strides = [1, 1]} : vector<4x128xf32> to vector<4x32xf32>
    %124 = vector.extract_strided_slice %122 {offsets = [0, 32], sizes = [4, 32], strides = [1, 1]} : vector<4x128xf32> to vector<4x32xf32>
    %125 = vector.extract_strided_slice %122 {offsets = [0, 64], sizes = [4, 32], strides = [1, 1]} : vector<4x128xf32> to vector<4x32xf32>
    %126 = vector.extract_strided_slice %122 {offsets = [0, 96], sizes = [4, 32], strides = [1, 1]} : vector<4x128xf32> to vector<4x32xf32>
    %127 = arith.mulf %124, %89 : vector<4x32xf32>
    %128 = arith.mulf %123, %125 : vector<4x32xf32>
    %129 = arith.addf %127, %128 : vector<4x32xf32>
    %130 = math.tanh %129 : vector<4x32xf32>
    %131 = arith.mulf %126, %130 : vector<4x32xf32>
    %c3_i32 = arith.constant 3 : i32
    %132 = arith.index_cast %c3_i32 : i32 to index
    %c0_23 = arith.constant 0 : index
    %c0_24 = arith.constant 0 : index
    %133 = vector.load %arg1[%132, %c0_23, %c0_24] : memref<8x4x128xf32, #tpu.memory_space<vmem>>, vector<1x4x128xf32>
    %134 = vector.shape_cast %133 : vector<1x4x128xf32> to vector<4x128xf32>
    %cst_25 = arith.constant dense<0.000000e+00> : vector<4x128xf32>
    %135 = tpu.matmul %112, %0, %cst_25 {dimension_numbers = #tpu.dot_dimension_numbers<[1], [0], [0], [1], [0, 0, 1, 1], [], []>} : vector<4x32xf32>, vector<32x128xf32>, vector<4x128xf32> -> vector<4x128xf32>
    %136 = arith.addf %134, %135 : vector<4x128xf32>
    %137 = math.tanh %136 : vector<4x128xf32>
    %138 = arith.negf %136 : vector<4x128xf32>
    %139 = math.exp %138 : vector<4x128xf32>
    %cst_26 = arith.constant 1.000000e+00 : f32
    %140 = vector.broadcast %cst_26 : f32 to vector<4x128xf32>
    %141 = arith.addf %140, %139 : vector<4x128xf32>
    %142 = arith.divf %140, %141 : vector<4x128xf32>
    %143 = arith.select %10, %137, %142 : vector<4x128xi1>, vector<4x128xf32>
    %144 = vector.extract_strided_slice %143 {offsets = [0, 0], sizes = [4, 32], strides = [1, 1]} : vector<4x128xf32> to vector<4x32xf32>
    %145 = vector.extract_strided_slice %143 {offsets = [0, 32], sizes = [4, 32], strides = [1, 1]} : vector<4x128xf32> to vector<4x32xf32>
    %146 = vector.extract_strided_slice %143 {offsets = [0, 64], sizes = [4, 32], strides = [1, 1]} : vector<4x128xf32> to vector<4x32xf32>
    %147 = vector.extract_strided_slice %143 {offsets = [0, 96], sizes = [4, 32], strides = [1, 1]} : vector<4x128xf32> to vector<4x32xf32>
    %148 = arith.mulf %145, %110 : vector<4x32xf32>
    %149 = arith.mulf %144, %146 : vector<4x32xf32>
    %150 = arith.addf %148, %149 : vector<4x32xf32>
    %151 = math.tanh %150 : vector<4x32xf32>
    %152 = arith.mulf %147, %151 : vector<4x32xf32>
    %153 = tpu.concatenate %152, %131 in 1 : vector<4x32xf32>, vector<4x32xf32> -> vector<4x64xf32>
    %cst_27 = arith.constant dense<0.000000e+00> : vector<4x128xf32>
    %154 = tpu.matmul %153, %1, %cst_27 {dimension_numbers = #tpu.dot_dimension_numbers<[1], [0], [0], [1], [0, 0, 1, 1], [], []>} : vector<4x64xf32>, vector<64x128xf32>, vector<4x128xf32> -> vector<4x128xf32>
    %155 = arith.addf %154, %4 : vector<4x128xf32>
    %156 = math.tanh %155 : vector<4x128xf32>
    %157 = arith.negf %155 : vector<4x128xf32>
    %158 = math.exp %157 : vector<4x128xf32>
    %cst_28 = arith.constant 1.000000e+00 : f32
    %159 = vector.broadcast %cst_28 : f32 to vector<4x128xf32>
    %160 = arith.addf %159, %158 : vector<4x128xf32>
    %161 = arith.divf %159, %160 : vector<4x128xf32>
    %162 = arith.select %10, %156, %161 : vector<4x128xi1>, vector<4x128xf32>
    %163 = vector.extract_strided_slice %162 {offsets = [0, 0], sizes = [4, 32], strides = [1, 1]} : vector<4x128xf32> to vector<4x32xf32>
    %164 = vector.extract_strided_slice %162 {offsets = [0, 32], sizes = [4, 32], strides = [1, 1]} : vector<4x128xf32> to vector<4x32xf32>
    %165 = vector.extract_strided_slice %162 {offsets = [0, 64], sizes = [4, 32], strides = [1, 1]} : vector<4x128xf32> to vector<4x32xf32>
    %166 = vector.extract_strided_slice %162 {offsets = [0, 96], sizes = [4, 32], strides = [1, 1]} : vector<4x128xf32> to vector<4x32xf32>
    %167 = arith.mulf %164, %129 : vector<4x32xf32>
    %168 = arith.mulf %163, %165 : vector<4x32xf32>
    %169 = arith.addf %167, %168 : vector<4x32xf32>
    %170 = math.tanh %169 : vector<4x32xf32>
    %171 = arith.mulf %166, %170 : vector<4x32xf32>
    %c4_i32 = arith.constant 4 : i32
    %172 = arith.index_cast %c4_i32 : i32 to index
    %c0_29 = arith.constant 0 : index
    %c0_30 = arith.constant 0 : index
    %173 = vector.load %arg1[%172, %c0_29, %c0_30] : memref<8x4x128xf32, #tpu.memory_space<vmem>>, vector<1x4x128xf32>
    %174 = vector.shape_cast %173 : vector<1x4x128xf32> to vector<4x128xf32>
    %cst_31 = arith.constant dense<0.000000e+00> : vector<4x128xf32>
    %175 = tpu.matmul %152, %0, %cst_31 {dimension_numbers = #tpu.dot_dimension_numbers<[1], [0], [0], [1], [0, 0, 1, 1], [], []>} : vector<4x32xf32>, vector<32x128xf32>, vector<4x128xf32> -> vector<4x128xf32>
    %176 = arith.addf %174, %175 : vector<4x128xf32>
    %177 = math.tanh %176 : vector<4x128xf32>
    %178 = arith.negf %176 : vector<4x128xf32>
    %179 = math.exp %178 : vector<4x128xf32>
    %cst_32 = arith.constant 1.000000e+00 : f32
    %180 = vector.broadcast %cst_32 : f32 to vector<4x128xf32>
    %181 = arith.addf %180, %179 : vector<4x128xf32>
    %182 = arith.divf %180, %181 : vector<4x128xf32>
    %183 = arith.select %10, %177, %182 : vector<4x128xi1>, vector<4x128xf32>
    %184 = vector.extract_strided_slice %183 {offsets = [0, 0], sizes = [4, 32], strides = [1, 1]} : vector<4x128xf32> to vector<4x32xf32>
    %185 = vector.extract_strided_slice %183 {offsets = [0, 32], sizes = [4, 32], strides = [1, 1]} : vector<4x128xf32> to vector<4x32xf32>
    %186 = vector.extract_strided_slice %183 {offsets = [0, 64], sizes = [4, 32], strides = [1, 1]} : vector<4x128xf32> to vector<4x32xf32>
    %187 = vector.extract_strided_slice %183 {offsets = [0, 96], sizes = [4, 32], strides = [1, 1]} : vector<4x128xf32> to vector<4x32xf32>
    %188 = arith.mulf %185, %150 : vector<4x32xf32>
    %189 = arith.mulf %184, %186 : vector<4x32xf32>
    %190 = arith.addf %188, %189 : vector<4x32xf32>
    %191 = math.tanh %190 : vector<4x32xf32>
    %192 = arith.mulf %187, %191 : vector<4x32xf32>
    %193 = tpu.concatenate %192, %171 in 1 : vector<4x32xf32>, vector<4x32xf32> -> vector<4x64xf32>
    %cst_33 = arith.constant dense<0.000000e+00> : vector<4x128xf32>
    %194 = tpu.matmul %193, %1, %cst_33 {dimension_numbers = #tpu.dot_dimension_numbers<[1], [0], [0], [1], [0, 0, 1, 1], [], []>} : vector<4x64xf32>, vector<64x128xf32>, vector<4x128xf32> -> vector<4x128xf32>
    %195 = arith.addf %194, %4 : vector<4x128xf32>
    %196 = math.tanh %195 : vector<4x128xf32>
    %197 = arith.negf %195 : vector<4x128xf32>
    %198 = math.exp %197 : vector<4x128xf32>
    %cst_34 = arith.constant 1.000000e+00 : f32
    %199 = vector.broadcast %cst_34 : f32 to vector<4x128xf32>
    %200 = arith.addf %199, %198 : vector<4x128xf32>
    %201 = arith.divf %199, %200 : vector<4x128xf32>
    %202 = arith.select %10, %196, %201 : vector<4x128xi1>, vector<4x128xf32>
    %203 = vector.extract_strided_slice %202 {offsets = [0, 0], sizes = [4, 32], strides = [1, 1]} : vector<4x128xf32> to vector<4x32xf32>
    %204 = vector.extract_strided_slice %202 {offsets = [0, 32], sizes = [4, 32], strides = [1, 1]} : vector<4x128xf32> to vector<4x32xf32>
    %205 = vector.extract_strided_slice %202 {offsets = [0, 64], sizes = [4, 32], strides = [1, 1]} : vector<4x128xf32> to vector<4x32xf32>
    %206 = vector.extract_strided_slice %202 {offsets = [0, 96], sizes = [4, 32], strides = [1, 1]} : vector<4x128xf32> to vector<4x32xf32>
    %207 = arith.mulf %204, %169 : vector<4x32xf32>
    %208 = arith.mulf %203, %205 : vector<4x32xf32>
    %209 = arith.addf %207, %208 : vector<4x32xf32>
    %210 = math.tanh %209 : vector<4x32xf32>
    %211 = arith.mulf %206, %210 : vector<4x32xf32>
    %c5_i32 = arith.constant 5 : i32
    %212 = arith.index_cast %c5_i32 : i32 to index
    %c0_35 = arith.constant 0 : index
    %c0_36 = arith.constant 0 : index
    %213 = vector.load %arg1[%212, %c0_35, %c0_36] : memref<8x4x128xf32, #tpu.memory_space<vmem>>, vector<1x4x128xf32>
    %214 = vector.shape_cast %213 : vector<1x4x128xf32> to vector<4x128xf32>
    %cst_37 = arith.constant dense<0.000000e+00> : vector<4x128xf32>
    %215 = tpu.matmul %192, %0, %cst_37 {dimension_numbers = #tpu.dot_dimension_numbers<[1], [0], [0], [1], [0, 0, 1, 1], [], []>} : vector<4x32xf32>, vector<32x128xf32>, vector<4x128xf32> -> vector<4x128xf32>
    %216 = arith.addf %214, %215 : vector<4x128xf32>
    %217 = math.tanh %216 : vector<4x128xf32>
    %218 = arith.negf %216 : vector<4x128xf32>
    %219 = math.exp %218 : vector<4x128xf32>
    %cst_38 = arith.constant 1.000000e+00 : f32
    %220 = vector.broadcast %cst_38 : f32 to vector<4x128xf32>
    %221 = arith.addf %220, %219 : vector<4x128xf32>
    %222 = arith.divf %220, %221 : vector<4x128xf32>
    %223 = arith.select %10, %217, %222 : vector<4x128xi1>, vector<4x128xf32>
    %224 = vector.extract_strided_slice %223 {offsets = [0, 0], sizes = [4, 32], strides = [1, 1]} : vector<4x128xf32> to vector<4x32xf32>
    %225 = vector.extract_strided_slice %223 {offsets = [0, 32], sizes = [4, 32], strides = [1, 1]} : vector<4x128xf32> to vector<4x32xf32>
    %226 = vector.extract_strided_slice %223 {offsets = [0, 64], sizes = [4, 32], strides = [1, 1]} : vector<4x128xf32> to vector<4x32xf32>
    %227 = vector.extract_strided_slice %223 {offsets = [0, 96], sizes = [4, 32], strides = [1, 1]} : vector<4x128xf32> to vector<4x32xf32>
    %228 = arith.mulf %225, %190 : vector<4x32xf32>
    %229 = arith.mulf %224, %226 : vector<4x32xf32>
    %230 = arith.addf %228, %229 : vector<4x32xf32>
    %231 = math.tanh %230 : vector<4x32xf32>
    %232 = arith.mulf %227, %231 : vector<4x32xf32>
    %233 = tpu.concatenate %232, %211 in 1 : vector<4x32xf32>, vector<4x32xf32> -> vector<4x64xf32>
    %cst_39 = arith.constant dense<0.000000e+00> : vector<4x128xf32>
    %234 = tpu.matmul %233, %1, %cst_39 {dimension_numbers = #tpu.dot_dimension_numbers<[1], [0], [0], [1], [0, 0, 1, 1], [], []>} : vector<4x64xf32>, vector<64x128xf32>, vector<4x128xf32> -> vector<4x128xf32>
    %235 = arith.addf %234, %4 : vector<4x128xf32>
    %236 = math.tanh %235 : vector<4x128xf32>
    %237 = arith.negf %235 : vector<4x128xf32>
    %238 = math.exp %237 : vector<4x128xf32>
    %cst_40 = arith.constant 1.000000e+00 : f32
    %239 = vector.broadcast %cst_40 : f32 to vector<4x128xf32>
    %240 = arith.addf %239, %238 : vector<4x128xf32>
    %241 = arith.divf %239, %240 : vector<4x128xf32>
    %242 = arith.select %10, %236, %241 : vector<4x128xi1>, vector<4x128xf32>
    %243 = vector.extract_strided_slice %242 {offsets = [0, 0], sizes = [4, 32], strides = [1, 1]} : vector<4x128xf32> to vector<4x32xf32>
    %244 = vector.extract_strided_slice %242 {offsets = [0, 32], sizes = [4, 32], strides = [1, 1]} : vector<4x128xf32> to vector<4x32xf32>
    %245 = vector.extract_strided_slice %242 {offsets = [0, 64], sizes = [4, 32], strides = [1, 1]} : vector<4x128xf32> to vector<4x32xf32>
    %246 = vector.extract_strided_slice %242 {offsets = [0, 96], sizes = [4, 32], strides = [1, 1]} : vector<4x128xf32> to vector<4x32xf32>
    %247 = arith.mulf %244, %209 : vector<4x32xf32>
    %248 = arith.mulf %243, %245 : vector<4x32xf32>
    %249 = arith.addf %247, %248 : vector<4x32xf32>
    %250 = math.tanh %249 : vector<4x32xf32>
    %251 = arith.mulf %246, %250 : vector<4x32xf32>
    %c6_i32 = arith.constant 6 : i32
    %252 = arith.index_cast %c6_i32 : i32 to index
    %c0_41 = arith.constant 0 : index
    %c0_42 = arith.constant 0 : index
    %253 = vector.load %arg1[%252, %c0_41, %c0_42] : memref<8x4x128xf32, #tpu.memory_space<vmem>>, vector<1x4x128xf32>
    %254 = vector.shape_cast %253 : vector<1x4x128xf32> to vector<4x128xf32>
    %cst_43 = arith.constant dense<0.000000e+00> : vector<4x128xf32>
    %255 = tpu.matmul %232, %0, %cst_43 {dimension_numbers = #tpu.dot_dimension_numbers<[1], [0], [0], [1], [0, 0, 1, 1], [], []>} : vector<4x32xf32>, vector<32x128xf32>, vector<4x128xf32> -> vector<4x128xf32>
    %256 = arith.addf %254, %255 : vector<4x128xf32>
    %257 = math.tanh %256 : vector<4x128xf32>
    %258 = arith.negf %256 : vector<4x128xf32>
    %259 = math.exp %258 : vector<4x128xf32>
    %cst_44 = arith.constant 1.000000e+00 : f32
    %260 = vector.broadcast %cst_44 : f32 to vector<4x128xf32>
    %261 = arith.addf %260, %259 : vector<4x128xf32>
    %262 = arith.divf %260, %261 : vector<4x128xf32>
    %263 = arith.select %10, %257, %262 : vector<4x128xi1>, vector<4x128xf32>
    %264 = vector.extract_strided_slice %263 {offsets = [0, 0], sizes = [4, 32], strides = [1, 1]} : vector<4x128xf32> to vector<4x32xf32>
    %265 = vector.extract_strided_slice %263 {offsets = [0, 32], sizes = [4, 32], strides = [1, 1]} : vector<4x128xf32> to vector<4x32xf32>
    %266 = vector.extract_strided_slice %263 {offsets = [0, 64], sizes = [4, 32], strides = [1, 1]} : vector<4x128xf32> to vector<4x32xf32>
    %267 = vector.extract_strided_slice %263 {offsets = [0, 96], sizes = [4, 32], strides = [1, 1]} : vector<4x128xf32> to vector<4x32xf32>
    %268 = arith.mulf %265, %230 : vector<4x32xf32>
    %269 = arith.mulf %264, %266 : vector<4x32xf32>
    %270 = arith.addf %268, %269 : vector<4x32xf32>
    %271 = math.tanh %270 : vector<4x32xf32>
    %272 = arith.mulf %267, %271 : vector<4x32xf32>
    %273 = tpu.concatenate %272, %251 in 1 : vector<4x32xf32>, vector<4x32xf32> -> vector<4x64xf32>
    %cst_45 = arith.constant dense<0.000000e+00> : vector<4x128xf32>
    %274 = tpu.matmul %273, %1, %cst_45 {dimension_numbers = #tpu.dot_dimension_numbers<[1], [0], [0], [1], [0, 0, 1, 1], [], []>} : vector<4x64xf32>, vector<64x128xf32>, vector<4x128xf32> -> vector<4x128xf32>
    %275 = arith.addf %274, %4 : vector<4x128xf32>
    %276 = math.tanh %275 : vector<4x128xf32>
    %277 = arith.negf %275 : vector<4x128xf32>
    %278 = math.exp %277 : vector<4x128xf32>
    %cst_46 = arith.constant 1.000000e+00 : f32
    %279 = vector.broadcast %cst_46 : f32 to vector<4x128xf32>
    %280 = arith.addf %279, %278 : vector<4x128xf32>
    %281 = arith.divf %279, %280 : vector<4x128xf32>
    %282 = arith.select %10, %276, %281 : vector<4x128xi1>, vector<4x128xf32>
    %283 = vector.extract_strided_slice %282 {offsets = [0, 0], sizes = [4, 32], strides = [1, 1]} : vector<4x128xf32> to vector<4x32xf32>
    %284 = vector.extract_strided_slice %282 {offsets = [0, 32], sizes = [4, 32], strides = [1, 1]} : vector<4x128xf32> to vector<4x32xf32>
    %285 = vector.extract_strided_slice %282 {offsets = [0, 64], sizes = [4, 32], strides = [1, 1]} : vector<4x128xf32> to vector<4x32xf32>
    %286 = vector.extract_strided_slice %282 {offsets = [0, 96], sizes = [4, 32], strides = [1, 1]} : vector<4x128xf32> to vector<4x32xf32>
    %287 = arith.mulf %284, %249 : vector<4x32xf32>
    %288 = arith.mulf %283, %285 : vector<4x32xf32>
    %289 = arith.addf %287, %288 : vector<4x32xf32>
    %290 = math.tanh %289 : vector<4x32xf32>
    %291 = arith.mulf %286, %290 : vector<4x32xf32>
    %c7_i32 = arith.constant 7 : i32
    %292 = arith.index_cast %c7_i32 : i32 to index
    %c0_47 = arith.constant 0 : index
    %c0_48 = arith.constant 0 : index
    %293 = vector.load %arg1[%292, %c0_47, %c0_48] : memref<8x4x128xf32, #tpu.memory_space<vmem>>, vector<1x4x128xf32>
    %294 = vector.shape_cast %293 : vector<1x4x128xf32> to vector<4x128xf32>
    %cst_49 = arith.constant dense<0.000000e+00> : vector<4x128xf32>
    %295 = tpu.matmul %272, %0, %cst_49 {dimension_numbers = #tpu.dot_dimension_numbers<[1], [0], [0], [1], [0, 0, 1, 1], [], []>} : vector<4x32xf32>, vector<32x128xf32>, vector<4x128xf32> -> vector<4x128xf32>
    %296 = arith.addf %294, %295 : vector<4x128xf32>
    %297 = math.tanh %296 : vector<4x128xf32>
    %298 = arith.negf %296 : vector<4x128xf32>
    %299 = math.exp %298 : vector<4x128xf32>
    %cst_50 = arith.constant 1.000000e+00 : f32
    %300 = vector.broadcast %cst_50 : f32 to vector<4x128xf32>
    %301 = arith.addf %300, %299 : vector<4x128xf32>
    %302 = arith.divf %300, %301 : vector<4x128xf32>
    %303 = arith.select %10, %297, %302 : vector<4x128xi1>, vector<4x128xf32>
    %304 = vector.extract_strided_slice %303 {offsets = [0, 0], sizes = [4, 32], strides = [1, 1]} : vector<4x128xf32> to vector<4x32xf32>
    %305 = vector.extract_strided_slice %303 {offsets = [0, 32], sizes = [4, 32], strides = [1, 1]} : vector<4x128xf32> to vector<4x32xf32>
    %306 = vector.extract_strided_slice %303 {offsets = [0, 64], sizes = [4, 32], strides = [1, 1]} : vector<4x128xf32> to vector<4x32xf32>
    %307 = vector.extract_strided_slice %303 {offsets = [0, 96], sizes = [4, 32], strides = [1, 1]} : vector<4x128xf32> to vector<4x32xf32>
    %308 = arith.mulf %305, %270 : vector<4x32xf32>
    %309 = arith.mulf %304, %306 : vector<4x32xf32>
    %310 = arith.addf %308, %309 : vector<4x32xf32>
    %311 = math.tanh %310 : vector<4x32xf32>
    %312 = arith.mulf %307, %311 : vector<4x32xf32>
    %313 = tpu.concatenate %312, %291 in 1 : vector<4x32xf32>, vector<4x32xf32> -> vector<4x64xf32>
    %cst_51 = arith.constant dense<0.000000e+00> : vector<4x128xf32>
    %314 = tpu.matmul %313, %1, %cst_51 {dimension_numbers = #tpu.dot_dimension_numbers<[1], [0], [0], [1], [0, 0, 1, 1], [], []>} : vector<4x64xf32>, vector<64x128xf32>, vector<4x128xf32> -> vector<4x128xf32>
    %315 = arith.addf %314, %4 : vector<4x128xf32>
    %316 = math.tanh %315 : vector<4x128xf32>
    %317 = arith.negf %315 : vector<4x128xf32>
    %318 = math.exp %317 : vector<4x128xf32>
    %cst_52 = arith.constant 1.000000e+00 : f32
    %319 = vector.broadcast %cst_52 : f32 to vector<4x128xf32>
    %320 = arith.addf %319, %318 : vector<4x128xf32>
    %321 = arith.divf %319, %320 : vector<4x128xf32>
    %322 = arith.select %10, %316, %321 : vector<4x128xi1>, vector<4x128xf32>
    %323 = vector.extract_strided_slice %322 {offsets = [0, 0], sizes = [4, 32], strides = [1, 1]} : vector<4x128xf32> to vector<4x32xf32>
    %324 = vector.extract_strided_slice %322 {offsets = [0, 32], sizes = [4, 32], strides = [1, 1]} : vector<4x128xf32> to vector<4x32xf32>
    %325 = vector.extract_strided_slice %322 {offsets = [0, 64], sizes = [4, 32], strides = [1, 1]} : vector<4x128xf32> to vector<4x32xf32>
    %326 = vector.extract_strided_slice %322 {offsets = [0, 96], sizes = [4, 32], strides = [1, 1]} : vector<4x128xf32> to vector<4x32xf32>
    %327 = arith.mulf %324, %289 : vector<4x32xf32>
    %328 = arith.mulf %323, %325 : vector<4x32xf32>
    %329 = arith.addf %327, %328 : vector<4x32xf32>
    %330 = math.tanh %329 : vector<4x32xf32>
    %331 = arith.mulf %326, %330 : vector<4x32xf32>
    %c8_i32 = arith.constant 8 : i32
    %cst_53 = arith.constant 0.000000e+00 : f32
    %332 = vector.broadcast %cst_53 : f32 to vector<4x32xf32>
    %333 = arith.maximumf %331, %332 : vector<4x32xf32>
    %c0_54 = arith.constant 0 : index
    %c0_55 = arith.constant 0 : index
    %334 = vector.load %arg5[%c0_54, %c0_55] : memref<32x3xf32, #tpu.memory_space<vmem>>, vector<32x3xf32>
    %cst_56 = arith.constant dense<0.000000e+00> : vector<4x3xf32>
    %335 = tpu.matmul %333, %334, %cst_56 {dimension_numbers = #tpu.dot_dimension_numbers<[1], [0], [0], [1], [0, 0, 1, 1], [], []>} : vector<4x32xf32>, vector<32x3xf32>, vector<4x3xf32> -> vector<4x3xf32>
    %c0_57 = arith.constant 0 : index
    %c0_58 = arith.constant 0 : index
    %336 = vector.load %arg6[%c0_57, %c0_58] : memref<1x3xf32, #tpu.memory_space<vmem>>, vector<1x3xf32>
    %337 = vector.broadcast %336 : vector<1x3xf32> to vector<4x3xf32>
    %338 = arith.addf %335, %337 : vector<4x3xf32>
    %cst_59 = arith.constant dense<0xFF800000> : vector<4xf32>
    %339 = vector.multi_reduction <maximumf>, %338, %cst_59 [1] : vector<4x3xf32> to vector<4xf32>
    %340 = vector.shape_cast %339 : vector<4xf32> to vector<4x1xf32>
    %341 = vector.broadcast %340 : vector<4x1xf32> to vector<4x3xf32>
    %342 = arith.subf %338, %341 : vector<4x3xf32>
    %343 = math.exp %342 : vector<4x3xf32>
    %cst_60 = arith.constant dense<0.000000e+00> : vector<4xf32>
    %344 = vector.multi_reduction <add>, %343, %cst_60 [1] : vector<4x3xf32> to vector<4xf32>
    %345 = vector.shape_cast %344 : vector<4xf32> to vector<4x1xf32>
    %346 = vector.broadcast %345 : vector<4x1xf32> to vector<4x3xf32>
    %347 = arith.divf %343, %346 : vector<4x3xf32>
    %c0_61 = arith.constant 0 : index
    %c0_62 = arith.constant 0 : index
    %348 = vector.load %arg7[%c0_61, %c0_62] : memref<4x3xf32, #tpu.memory_space<vmem>>, vector<4x3xf32>
    tpu.vector_store %arg7[%c0_61, %c0_62], %347 {strides = array<i32>} : memref<4x3xf32, #tpu.memory_space<vmem>>, vector<4x3xf32>,
    return
  }
  func.func @transform_0(%arg0: i32) -> (i32, i32, i32) {
    %c0_i32 = arith.constant 0 : i32
    %c0_i32_0 = arith.constant 0 : i32
    %c0_i32_1 = arith.constant 0 : i32
    return %c0_i32, %arg0, %c0_i32_0 : i32, i32, i32
  }
  func.func @transform_1(%arg0: i32) -> (i32, i32) {
    %c0_i32 = arith.constant 0 : i32
    %c0_i32_0 = arith.constant 0 : i32
    %c0_i32_1 = arith.constant 0 : i32
    return %c0_i32, %c0_i32_0 : i32, i32
  }
  func.func @transform_2(%arg0: i32) -> (i32, i32) {
    %c0_i32 = arith.constant 0 : i32
    %c0_i32_0 = arith.constant 0 : i32
    %c0_i32_1 = arith.constant 0 : i32
    return %c0_i32, %c0_i32_0 : i32, i32
  }
  func.func @transform_3(%arg0: i32) -> (i32, i32) {
    %c0_i32 = arith.constant 0 : i32
    %c0_i32_0 = arith.constant 0 : i32
    %c0_i32_1 = arith.constant 0 : i32
    return %c0_i32, %c0_i32_0 : i32, i32
  }
  func.func @transform_4(%arg0: i32) -> (i32, i32) {
    %c0_i32 = arith.constant 0 : i32
    %c0_i32_0 = arith.constant 0 : i32
    %c0_i32_1 = arith.constant 0 : i32
    return %c0_i32, %c0_i32_0 : i32, i32
  }
  func.func @transform_5(%arg0: i32) -> (i32, i32) {
    %c0_i32 = arith.constant 0 : i32
    %c0_i32_0 = arith.constant 0 : i32
    %c0_i32_1 = arith.constant 0 : i32
    return %c0_i32, %c0_i32_0 : i32, i32
  }
  func.func @transform_6(%arg0: i32) -> (i32, i32) {
    %c0_i32 = arith.constant 0 : i32
    %c0_i32_0 = arith.constant 0 : i32
    return %arg0, %c0_i32 : i32, i32
  }
}

</mosaic_0001>

<llo_original>
// kernel: tpu_custom_call.1
$region0: #{tpu_custom_call.1}
  #allocation0 [shape = 'u32[]', space=smem, size = 0x4, offset = 0x4, fixed_abs, tag = 'smem constant byte address 0x4 - core index']
  #allocation1 [shape = 'u32[72,128]{1,0:T(1,128)}', space=vmem, size = 0x9000, scoped, tag = 'internal scratch']
  %s0 = inlined_call_operand.vmem [shape: f32[8,4,128], index: 0, kind: input, shape index: {}]
  %s1 = inlined_call_operand.hbm [shape: f32[32,128], index: 1, kind: input, shape index: {}]
  %s2 = inlined_call_operand.hbm [shape: f32[64,128], index: 2, kind: input, shape index: {}]
  %s3 = inlined_call_operand.vmem [shape: f32[1,128], index: 3, kind: input, shape index: {}]
  %s4 = inlined_call_operand.vmem [shape: f32[32,3], index: 4, kind: input, shape index: {}]
  %s5 = inlined_call_operand.vmem [shape: f32[1,3], index: 5, kind: input, shape index: {}]
  %s6 = inlined_call_operand.hbm [shape: f32[4,3], index: 6, kind: output, shape index: {}]
  %s7 = sld [smem:[#allocation0]]
  $region42: #{tpu_custom_call.1} parent=0
    _
  %s9 = ssub.s32 1, %s7
  %s10 = scalar_select 0, %s9, %s7
  $region1: #{tpu_custom_call.1} parent=0
    #allocation2 [shape = 'u8[16384]{0}', space=vmem, size = 0x4000, scoped, tag = 'input window, operand 1, single buffered']
    #allocation3 [shape = 's32[1]{0}', space=sflag, size = 0x4, scoped, tag = 'scoped memory for tpu_custom_call.1']
    #allocation4 [shape = 's32[1]{0}', space=sflag, size = 0x4, scoped, tag = 'scoped memory for tpu_custom_call.1']
    #allocation5 [shape = 'u8[32768]{0}', space=vmem, size = 0x8000, scoped, tag = 'input window, operand 2, single buffered']
    #allocation6 [shape = 's32[1]{0}', space=sflag, size = 0x4, scoped, tag = 'scoped memory for tpu_custom_call.1']
    #allocation7 [shape = 'u8[2048]{0}', space=vmem, size = 0x800, scoped, tag = 'output window, operand 0, single buffered']
    %11 = vsyncpa [#allocation3], 0
    %12 = vsyncpa [#allocation6], 0
    %13 = vsyncpa [#allocation4], 0
    // Predicated region
    $region2: #{tpu_custom_call.1} parent=1 // pred_check
      _
    $region3: #{tpu_custom_call.1} parent=1 // pred_check_branch
      %15 = sbr.rel (0) target = $region5
    $region4: #{tpu_custom_call.1} parent=1 // pred_region
      _
    $region5: #{tpu_custom_call.1} parent=1 // pred_fallthru
      _
    // Predicated region
    $region6: #{tpu_custom_call.1} parent=1 // pred_check
      _
    $region7: #{tpu_custom_call.1} parent=1 // pred_check_branch
      %17 = sbr.rel (0) target = $region9
    $region8: #{tpu_custom_call.1} parent=1 // pred_region
      %19 = vsyncadd [#allocation3], 0
      %s20 = sshll.u32 %s1, 4
      %s21 = int_to_ptr.hbm [resolvable:$true] %s20
      %s22 = sshll.u32 [#allocation2], 4
      %s23 = int_to_ptr.vmem [resolvable:$true] %s22
      %28 = dma.hbm_to_vmem [thread:$0]  %s21, 512, %s23, [#allocation3], 128, 128, 8
    $region9: #{tpu_custom_call.1} parent=1 // pred_fallthru
      _
    // Predicated region
    $region10: #{tpu_custom_call.1} parent=1 // pred_check
      _
    $region11: #{tpu_custom_call.1} parent=1 // pred_check_branch
      %30 = sbr.rel (0) target = $region13
    $region12: #{tpu_custom_call.1} parent=1 // pred_region
      %32 = vsyncadd [#allocation6], 0
      %s33 = sshll.u32 %s2, 4
      %s34 = int_to_ptr.hbm [resolvable:$true] %s33
      %s35 = sshll.u32 [#allocation5], 4
      %s36 = int_to_ptr.vmem [resolvable:$true] %s35
      %41 = dma.hbm_to_vmem [thread:$0]  %s34, 1024, %s36, [#allocation6], 128, 128, 8
    $region13: #{tpu_custom_call.1} parent=1 // pred_fallthru
      _
    // Predicated region
    $region14: #{tpu_custom_call.1} parent=1 // pred_check
      _
    $region15: #{tpu_custom_call.1} parent=1 // pred_check_branch
      %43 = sbr.rel (0) target = $region17
    $region16: #{tpu_custom_call.1} parent=1 // pred_region
      _
    $region17: #{tpu_custom_call.1} parent=1 // pred_fallthru
      _
    // Predicated region
    $region18: #{tpu_custom_call.1} parent=1 // pred_check
      _
    $region19: #{tpu_custom_call.1} parent=1 // pred_check_branch
      %45 = sbr.rel (0) target = $region21
    $region20: #{tpu_custom_call.1} parent=1 // pred_region
      _
    $region21: #{tpu_custom_call.1} parent=1 // pred_fallthru
      _
    // Predicated region
    $region22: #{tpu_custom_call.1} parent=1 // pred_check
      _
    $region23: #{tpu_custom_call.1} parent=1 // pred_check_branch
      %47 = sbr.rel (0) target = $region25
    $region24: #{tpu_custom_call.1} parent=1 // pred_region
      _
    $region25: #{tpu_custom_call.1} parent=1 // pred_fallthru
      _
    // Predicated region
    $region26: #{tpu_custom_call.1} parent=1 // pred_check
      _
    $region27: #{tpu_custom_call.1} parent=1 // pred_check_branch
      %49 = sbr.rel (0) target = $region29
    $region28: #{tpu_custom_call.1} parent=1 // pred_region
      %51 = dma.done [#allocation3], 512
    $region29: #{tpu_custom_call.1} parent=1 // pred_fallthru
      _
    // Predicated region
    $region30: #{tpu_custom_call.1} parent=1 // pred_check
      _
    $region31: #{tpu_custom_call.1} parent=1 // pred_check_branch
      %53 = sbr.rel (0) target = $region33
    $region32: #{tpu_custom_call.1} parent=1 // pred_region
      %55 = dma.done [#allocation6], 1024
    $region33: #{tpu_custom_call.1} parent=1 // pred_fallthru
      _
    %v56 = vld [vmem:[#allocation2] sm:$0xff]
    %v57 = vld [vmem:[#allocation2 + $0x8] sm:$0xff]
    %v58 = vld [vmem:[#allocation2 + $0x10] sm:$0xff]
    %v59 = vld [vmem:[#allocation2 + $0x18] sm:$0xff]
    %v60 = vld [vmem:[#allocation5] sm:$0xff]
    %v61 = vld [vmem:[#allocation5 + $0x8] sm:$0xff]
    %v62 = vld [vmem:[#allocation5 + $0x10] sm:$0xff]
    %v63 = vld [vmem:[#allocation5 + $0x18] sm:$0xff]
    %v64 = vld [vmem:[#allocation5 + $0x20] sm:$0xff]
    %v65 = vld [vmem:[#allocation5 + $0x28] sm:$0xff]
    %v66 = vld [vmem:[#allocation5 + $0x30] sm:$0xff]
    %v67 = vld [vmem:[#allocation5 + $0x38] sm:$0xff]
    %v68 = vld [vmem:[%s3] sm:$0x1]
    %v70 = vperm.slane %v68, 0
    %v72 = vlaneseq
    %v73 = vand.u32 %v72, 127
    %vm74 = vcmp.ge.s32.totalorder %v73, 64
    %vm75 = vcmp.lt.s32.totalorder %v73, 96
    %vm76 = vmand %vm74, %vm75
    %v77 = vld [vmem:[%s0] sm:$0xf]
    %vm78 = vcmask 261120
    %v80 = vsel %vm78, 0.0, 0
    %82 = vmatpush.msra.mxu0 0.0
    %83 = vmatpush.msra.mxu0 0.0
    %84 = vmatpush.msra.mxu0 0.0
    %85 = vmatpush.msra.mxu0 0.0
    %86 = vmatpush.msra.mxu0 0.0
    %87 = vmatpush.msra.mxu0 0.0
    %88 = vmatpush.msra.mxu0 0.0
    %89 = vmatpush.msra.mxu0 0.0
    %90 = vmatpush.msra.mxu0 0.0
    %91 = vmatpush.msra.mxu0 0.0
    %92 = vmatpush.msra.mxu0 0.0
    %93 = vmatpush.msra.mxu0 0.0
    %94 = vmatpush.msra.mxu0 %v59
    %95 = vmatpush.msra.mxu0 %v58
    %96 = vmatpush.msra.mxu0 %v57
    %97 = vmatpush.msra.mxu0 %v56
    %98 = vmatmul.f32.gmra.mxu0 %v80
    %v99 = vpop.f32.mrf.mxu0
    %v100 = vadd.f32 0.0, %v99
    %101 = vdwg.mxu0
    %v102 = vadd.f32 %v77, %v100
    %v103 = vtanh.pop %v102
    %v104 = vxor.u32 %v102, 2147483648
    %v105 = vmul.f32 %v104, 1.442695
    %v106 = vpow.pop %v105
    %v107 = vadd.f32 %v106, 1.0
    %v108 = vrcp.pop %v107
    %v109 = vmul.f32 %v107, %v108
    %v110 = vsub.f32 1.0, %v109
    %v111 = vmul.f32 %v108, %v110
    %v112 = vadd.f32 %v108, %v111
    %vm113 = vweird.f32 %v107
    %vm114 = vweird.f32 %v108
    %vm115 = vmor %vm113, %vm114
    %v116 = vsel %vm115, %v108, %v112
    %v117 = vand.u32 2147483647, %v107
    %vm118 = vcmp.eq.f32.partialorder %v117, 8.507059e+37
    %v119 = vand.u32 %v107, 2147483648
    %v120 = vor.u32 1.1754944e-38, %v119
    %v121 = vsel %vm118, %v120, %v116
    %v122 = vmul.f32 1.0, %v121
    %v123 = vsel %vm76, %v103, %v122
    %v124 = vmul.f32 %v123, 0.0
    %126 = vrot.lane.b32.xlu0 %v123, 64
    %v127 = vpop.permute.xlu0 %126
    %v129 = vmul.f32 %v123, %v127
    %131 = vrot.lane.b32.xlu0 %v129, 32
    %v132 = vpop.permute.xlu0 %131
    %v134 = vadd.f32 %v124, %v132
    %v135 = vtanh.pop %v134
    %137 = vrot.lane.b32.xlu0 %v135, 64
    %v138 = vpop.permute.xlu0 %137
    %v140 = vmul.f32 %v123, %v138
    %142 = vrot.lane.b32.xlu0 %v140, 32
    %v143 = vpop.permute.xlu0 %142
    %v145 = vsel %vm78, %v143, 0.0
    %vm146 = vcmask 523264
    %v148 = vsel %vm146, %v145, 0
    %150 = vmatpush.msra.mxu0 0.0
    %151 = vmatpush.msra.mxu0 0.0
    %152 = vmatpush.msra.mxu0 0.0
    %153 = vmatpush.msra.mxu0 0.0
    %154 = vmatpush.msra.mxu0 0.0
    %155 = vmatpush.msra.mxu0 0.0
    %156 = vmatpush.msra.mxu0 0.0
    %157 = vmatpush.msra.mxu0 0.0
    %158 = vmatpush.msra.mxu0 %v67
    %159 = vmatpush.msra.mxu0 %v66
    %160 = vmatpush.msra.mxu0 %v65
    %161 = vmatpush.msra.mxu0 %v64
    %162 = vmatpush.msra.mxu0 %v63
    %163 = vmatpush.msra.mxu0 %v62
    %164 = vmatpush.msra.mxu0 %v61
    %165 = vmatpush.msra.mxu0 %v60
    %166 = vmatmul.f32.gmra.mxu0 %v148
    %v167 = vpop.f32.mrf.mxu0
    %v168 = vadd.f32 %v70, %v167
    %169 = vdwg.mxu0
    %v170 = vtanh.pop %v168
    %v171 = vxor.u32 %v168, 2147483648
    %v172 = vmul.f32 %v171, 1.442695
    %v173 = vpow.pop %v172
    %v174 = vadd.f32 %v173, 1.0
    %v175 = vrcp.pop %v174
    %v176 = vmul.f32 %v174, %v175
    %v177 = vsub.f32 1.0, %v176
    %v178 = vmul.f32 %v175, %v177
    %v179 = vadd.f32 %v175, %v178
    %vm180 = vweird.f32 %v174
    %vm181 = vweird.f32 %v175
    %vm182 = vmor %vm180, %vm181
    %v183 = vsel %vm182, %v175, %v179
    %v184 = vand.u32 2147483647, %v174
    %vm185 = vcmp.eq.f32.partialorder %v184, 8.507059e+37
    %v186 = vand.u32 %v174, 2147483648
    %v187 = vor.u32 1.1754944e-38, %v186
    %v188 = vsel %vm185, %v187, %v183
    %v189 = vmul.f32 1.0, %v188
    %v190 = vsel %vm76, %v170, %v189
    %v191 = vmul.f32 %v190, 0.0
    %193 = vrot.lane.b32.xlu0 %v190, 64
    %v194 = vpop.permute.xlu0 %193
    %v196 = vmul.f32 %v190, %v194
    %198 = vrot.lane.b32.xlu0 %v196, 32
    %v199 = vpop.permute.xlu0 %198
    %v201 = vadd.f32 %v191, %v199
    %v202 = vtanh.pop %v201
    %204 = vrot.lane.b32.xlu0 %v202, 64
    %v205 = vpop.permute.xlu0 %204
    %v207 = vmul.f32 %v190, %v205
    %s208 = scalar_lea.vmem %s0, 4
    %v209 = vld [vmem:[%s208] sm:$0xf]
    %v210 = vsel %vm78, %v143, 0
    %212 = vmatpush.msra.mxu0 0.0
    %213 = vmatpush.msra.mxu0 0.0
    %214 = vmatpush.msra.mxu0 0.0
    %215 = vmatpush.msra.mxu0 0.0
    %216 = vmatpush.msra.mxu0 0.0
    %217 = vmatpush.msra.mxu0 0.0
    %218 = vmatpush.msra.mxu0 0.0
    %219 = vmatpush.msra.mxu0 0.0
    %220 = vmatpush.msra.mxu0 0.0
    %221 = vmatpush.msra.mxu0 0.0
    %222 = vmatpush.msra.mxu0 0.0
    %223 = vmatpush.msra.mxu0 0.0
    %224 = vmatpush.msra.mxu0 %v59
    %225 = vmatpush.msra.mxu0 %v58
    %226 = vmatpush.msra.mxu0 %v57
    %227 = vmatpush.msra.mxu0 %v56
    %228 = vmatmul.f32.gmra.mxu0 %v210
    %v229 = vpop.f32.mrf.mxu0
    %v230 = vadd.f32 0.0, %v229
    %231 = vdwg.mxu0
    %v232 = vadd.f32 %v209, %v230
    %v233 = vtanh.pop %v232
    %v234 = vxor.u32 %v232, 2147483648
    %v235 = vmul.f32 %v234, 1.442695
    %v236 = vpow.pop %v235
    %v237 = vadd.f32 %v236, 1.0
    %v238 = vrcp.pop %v237
    %v239 = vmul.f32 %v237, %v238
    %v240 = vsub.f32 1.0, %v239
    %v241 = vmul.f32 %v238, %v240
    %v242 = vadd.f32 %v238, %v241
    %vm243 = vweird.f32 %v237
    %vm244 = vweird.f32 %v238
    %vm245 = vmor %vm243, %vm244
    %v246 = vsel %vm245, %v238, %v242
    %v247 = vand.u32 2147483647, %v237
    %vm248 = vcmp.eq.f32.partialorder %v247, 8.507059e+37
    %v249 = vand.u32 %v237, 2147483648
    %v250 = vor.u32 1.1754944e-38, %v249
    %v251 = vsel %vm248, %v250, %v246
    %v252 = vmul.f32 1.0, %v251
    %v253 = vsel %vm76, %v233, %v252
    %v254 = vmul.f32 %v253, %v134
    %256 = vrot.lane.b32.xlu0 %v253, 64
    %v257 = vpop.permute.xlu0 %256
    %v259 = vmul.f32 %v253, %v257
    %261 = vrot.lane.b32.xlu0 %v259, 32
    %v262 = vpop.permute.xlu0 %261
    %v264 = vadd.f32 %v254, %v262
    %v265 = vtanh.pop %v264
    %267 = vrot.lane.b32.xlu0 %v265, 64
    %v268 = vpop.permute.xlu0 %267
    %v270 = vmul.f32 %v253, %v268
    %272 = vrot.lane.b32.xlu0 %v270, 32
    %v273 = vpop.permute.xlu0 %272
    %276 = vrot.lane.b32.xlu0 %v207, 64
    %v277 = vpop.permute.xlu0 %276
    %v279 = vsel %vm78, %v273, %v277
    %v281 = vsel %vm146, %v279, 0
    %283 = vmatpush.msra.mxu0 0.0
    %284 = vmatpush.msra.mxu0 0.0
    %285 = vmatpush.msra.mxu0 0.0
    %286 = vmatpush.msra.mxu0 0.0
    %287 = vmatpush.msra.mxu0 0.0
    %288 = vmatpush.msra.mxu0 0.0
    %289 = vmatpush.msra.mxu0 0.0
    %290 = vmatpush.msra.mxu0 0.0
    %291 = vmatpush.msra.mxu0 %v67
    %292 = vmatpush.msra.mxu0 %v66
    %293 = vmatpush.msra.mxu0 %v65
    %294 = vmatpush.msra.mxu0 %v64
    %295 = vmatpush.msra.mxu0 %v63
    %296 = vmatpush.msra.mxu0 %v62
    %297 = vmatpush.msra.mxu0 %v61
    %298 = vmatpush.msra.mxu0 %v60
    %299 = vmatmul.f32.gmra.mxu0 %v281
    %v300 = vpop.f32.mrf.mxu0
    %v301 = vadd.f32 %v70, %v300
    %302 = vdwg.mxu0
    %v303 = vtanh.pop %v301
    %v304 = vxor.u32 %v301, 2147483648
    %v305 = vmul.f32 %v304, 1.442695
    %v306 = vpow.pop %v305
    %v307 = vadd.f32 %v306, 1.0
    %v308 = vrcp.pop %v307
    %v309 = vmul.f32 %v307, %v308
    %v310 = vsub.f32 1.0, %v309
    %v311 = vmul.f32 %v308, %v310
    %v312 = vadd.f32 %v308, %v311
    %vm313 = vweird.f32 %v307
    %vm314 = vweird.f32 %v308
    %vm315 = vmor %vm313, %vm314
    %v316 = vsel %vm315, %v308, %v312
    %v317 = vand.u32 2147483647, %v307
    %vm318 = vcmp.eq.f32.partialorder %v317, 8.507059e+37
    %v319 = vand.u32 %v307, 2147483648
    %v320 = vor.u32 1.1754944e-38, %v319
    %v321 = vsel %vm318, %v320, %v316
    %v322 = vmul.f32 1.0, %v321
    %v323 = vsel %vm76, %v303, %v322
    %v324 = vmul.f32 %v323, %v201
    %326 = vrot.lane.b32.xlu0 %v323, 64
    %v327 = vpop.permute.xlu0 %326
    %v329 = vmul.f32 %v323, %v327
    %331 = vrot.lane.b32.xlu0 %v329, 32
    %v332 = vpop.permute.xlu0 %331
    %v334 = vadd.f32 %v324, %v332
    %v335 = vtanh.pop %v334
    %337 = vrot.lane.b32.xlu0 %v335, 64
    %v338 = vpop.permute.xlu0 %337
    %v340 = vmul.f32 %v323, %v338
    %s341 = scalar_lea.vmem %s0, 8
    %v342 = vld [vmem:[%s341] sm:$0xf]
    %v343 = vsel %vm78, %v273, 0
    %345 = vmatpush.msra.mxu0 0.0
    %346 = vmatpush.msra.mxu0 0.0
    %347 = vmatpush.msra.mxu0 0.0
    %348 = vmatpush.msra.mxu0 0.0
    %349 = vmatpush.msra.mxu0 0.0
    %350 = vmatpush.msra.mxu0 0.0
    %351 = vmatpush.msra.mxu0 0.0
    %352 = vmatpush.msra.mxu0 0.0
    %353 = vmatpush.msra.mxu0 0.0
    %354 = vmatpush.msra.mxu0 0.0
    %355 = vmatpush.msra.mxu0 0.0
    %356 = vmatpush.msra.mxu0 0.0
    %357 = vmatpush.msra.mxu0 %v59
    %358 = vmatpush.msra.mxu0 %v58
    %359 = vmatpush.msra.mxu0 %v57
    %360 = vmatpush.msra.mxu0 %v56
    %361 = vmatmul.f32.gmra.mxu0 %v343
    %v362 = vpop.f32.mrf.mxu0
    %v363 = vadd.f32 0.0, %v362
    %364 = vdwg.mxu0
    %v365 = vadd.f32 %v342, %v363
    %v366 = vtanh.pop %v365
    %v367 = vxor.u32 %v365, 2147483648
    %v368 = vmul.f32 %v367, 1.442695
    %v369 = vpow.pop %v368
    %v370 = vadd.f32 %v369, 1.0
    %v371 = vrcp.pop %v370
    %v372 = vmul.f32 %v370, %v371
    %v373 = vsub.f32 1.0, %v372
    %v374 = vmul.f32 %v371, %v373
    %v375 = vadd.f32 %v371, %v374
    %vm376 = vweird.f32 %v370
    %vm377 = vweird.f32 %v371
    %vm378 = vmor %vm376, %vm377
    %v379 = vsel %vm378, %v371, %v375
    %v380 = vand.u32 2147483647, %v370
    %vm381 = vcmp.eq.f32.partialorder %v380, 8.507059e+37
    %v382 = vand.u32 %v370, 2147483648
    %v383 = vor.u32 1.1754944e-38, %v382
    %v384 = vsel %vm381, %v383, %v379
    %v385 = vmul.f32 1.0, %v384
    %v386 = vsel %vm76, %v366, %v385
    %v387 = vmul.f32 %v386, %v264
    %389 = vrot.lane.b32.xlu0 %v386, 64
    %v390 = vpop.permute.xlu0 %389
    %v392 = vmul.f32 %v386, %v390
    %394 = vrot.lane.b32.xlu0 %v392, 32
    %v395 = vpop.permute.xlu0 %394
    %v397 = vadd.f32 %v387, %v395
    %v398 = vtanh.pop %v397
    %400 = vrot.lane.b32.xlu0 %v398, 64
    %v401 = vpop.permute.xlu0 %400
    %v403 = vmul.f32 %v386, %v401
    %405 = vrot.lane.b32.xlu0 %v403, 32
    %v406 = vpop.permute.xlu0 %405
    %409 = vrot.lane.b32.xlu0 %v340, 64
    %v410 = vpop.permute.xlu0 %409
    %v412 = vsel %vm78, %v406, %v410
    %v414 = vsel %vm146, %v412, 0
    %416 = vmatpush.msra.mxu0 0.0
    %417 = vmatpush.msra.mxu0 0.0
    %418 = vmatpush.msra.mxu0 0.0
    %419 = vmatpush.msra.mxu0 0.0
    %420 = vmatpush.msra.mxu0 0.0
    %421 = vmatpush.msra.mxu0 0.0
    %422 = vmatpush.msra.mxu0 0.0
    %423 = vmatpush.msra.mxu0 0.0
    %424 = vmatpush.msra.mxu0 %v67
    %425 = vmatpush.msra.mxu0 %v66
    %426 = vmatpush.msra.mxu0 %v65
    %427 = vmatpush.msra.mxu0 %v64
    %428 = vmatpush.msra.mxu0 %v63
    %429 = vmatpush.msra.mxu0 %v62
    %430 = vmatpush.msra.mxu0 %v61
    %431 = vmatpush.msra.mxu0 %v60
    %432 = vmatmul.f32.gmra.mxu0 %v414
    %v433 = vpop.f32.mrf.mxu0
    %v434 = vadd.f32 %v70, %v433
    %435 = vdwg.mxu0
    %v436 = vtanh.pop %v434
    %v437 = vxor.u32 %v434, 2147483648
    %v438 = vmul.f32 %v437, 1.442695
    %v439 = vpow.pop %v438
    %v440 = vadd.f32 %v439, 1.0
    %v441 = vrcp.pop %v440
    %v442 = vmul.f32 %v440, %v441
    %v443 = vsub.f32 1.0, %v442
    %v444 = vmul.f32 %v441, %v443
    %v445 = vadd.f32 %v441, %v444
    %vm446 = vweird.f32 %v440
    %vm447 = vweird.f32 %v441
    %vm448 = vmor %vm446, %vm447
    %v449 = vsel %vm448, %v441, %v445
    %v450 = vand.u32 2147483647, %v440
    %vm451 = vcmp.eq.f32.partialorder %v450, 8.507059e+37
    %v452 = vand.u32 %v440, 2147483648
    %v453 = vor.u32 1.1754944e-38, %v452
    %v454 = vsel %vm451, %v453, %v449
    %v455 = vmul.f32 1.0, %v454
    %v456 = vsel %vm76, %v436, %v455
    %v457 = vmul.f32 %v456, %v334
    %459 = vrot.lane.b32.xlu0 %v456, 64
    %v460 = vpop.permute.xlu0 %459
    %v462 = vmul.f32 %v456, %v460
    %464 = vrot.lane.b32.xlu0 %v462, 32
    %v465 = vpop.permute.xlu0 %464
    %v467 = vadd.f32 %v457, %v465
    %v468 = vtanh.pop %v467
    %470 = vrot.lane.b32.xlu0 %v468, 64
    %v471 = vpop.permute.xlu0 %470
    %v473 = vmul.f32 %v456, %v471
    %s474 = scalar_lea.vmem %s0, 12
    %v475 = vld [vmem:[%s474] sm:$0xf]
    %v476 = vsel %vm78, %v406, 0
    %478 = vmatpush.msra.mxu0 0.0
    %479 = vmatpush.msra.mxu0 0.0
    %480 = vmatpush.msra.mxu0 0.0
    %481 = vmatpush.msra.mxu0 0.0
    %482 = vmatpush.msra.mxu0 0.0
    %483 = vmatpush.msra.mxu0 0.0
    %484 = vmatpush.msra.mxu0 0.0
    %485 = vmatpush.msra.mxu0 0.0
    %486 = vmatpush.msra.mxu0 0.0
    %487 = vmatpush.msra.mxu0 0.0
    %488 = vmatpush.msra.mxu0 0.0
    %489 = vmatpush.msra.mxu0 0.0
    %490 = vmatpush.msra.mxu0 %v59
    %491 = vmatpush.msra.mxu0 %v58
    %492 = vmatpush.msra.mxu0 %v57
    %493 = vmatpush.msra.mxu0 %v56
    %494 = vmatmul.f32.gmra.mxu0 %v476
    %v495 = vpop.f32.mrf.mxu0
    %v496 = vadd.f32 0.0, %v495
    %497 = vdwg.mxu0
    %v498 = vadd.f32 %v475, %v496
    %v499 = vtanh.pop %v498
    %v500 = vxor.u32 %v498, 2147483648
    %v501 = vmul.f32 %v500, 1.442695
    %v502 = vpow.pop %v501
    %v503 = vadd.f32 %v502, 1.0
    %v504 = vrcp.pop %v503
    %v505 = vmul.f32 %v503, %v504
    %v506 = vsub.f32 1.0, %v505
    %v507 = vmul.f32 %v504, %v506
    %v508 = vadd.f32 %v504, %v507
    %vm509 = vweird.f32 %v503
    %vm510 = vweird.f32 %v504
    %vm511 = vmor %vm509, %vm510
    %v512 = vsel %vm511, %v504, %v508
    %v513 = vand.u32 2147483647, %v503
    %vm514 = vcmp.eq.f32.partialorder %v513, 8.507059e+37
    %v515 = vand.u32 %v503, 2147483648
    %v516 = vor.u32 1.1754944e-38, %v515
    %v517 = vsel %vm514, %v516, %v512
    %v518 = vmul.f32 1.0, %v517
    %v519 = vsel %vm76, %v499, %v518
    %v520 = vmul.f32 %v519, %v397
    %522 = vrot.lane.b32.xlu0 %v519, 64
    %v523 = vpop.permute.xlu0 %522
    %v525 = vmul.f32 %v519, %v523
    %527 = vrot.lane.b32.xlu0 %v525, 32
    %v528 = vpop.permute.xlu0 %527
    %v530 = vadd.f32 %v520, %v528
    %v531 = vtanh.pop %v530
    %533 = vrot.lane.b32.xlu0 %v531, 64
    %v534 = vpop.permute.xlu0 %533
    %v536 = vmul.f32 %v519, %v534
    %538 = vrot.lane.b32.xlu0 %v536, 32
    %v539 = vpop.permute.xlu0 %538
    %542 = vrot.lane.b32.xlu0 %v473, 64
    %v543 = vpop.permute.xlu0 %542
    %v545 = vsel %vm78, %v539, %v543
    %v547 = vsel %vm146, %v545, 0
    %549 = vmatpush.msra.mxu0 0.0
    %550 = vmatpush.msra.mxu0 0.0
    %551 = vmatpush.msra.mxu0 0.0
    %552 = vmatpush.msra.mxu0 0.0
    %553 = vmatpush.msra.mxu0 0.0
    %554 = vmatpush.msra.mxu0 0.0
    %555 = vmatpush.msra.mxu0 0.0
    %556 = vmatpush.msra.mxu0 0.0
    %557 = vmatpush.msra.mxu0 %v67
    %558 = vmatpush.msra.mxu0 %v66
    %559 = vmatpush.msra.mxu0 %v65
    %560 = vmatpush.msra.mxu0 %v64
    %561 = vmatpush.msra.mxu0 %v63
    %562 = vmatpush.msra.mxu0 %v62
    %563 = vmatpush.msra.mxu0 %v61
    %564 = vmatpush.msra.mxu0 %v60
    %565 = vmatmul.f32.gmra.mxu0 %v547
    %v566 = vpop.f32.mrf.mxu0
    %v567 = vadd.f32 %v70, %v566
    %568 = vdwg.mxu0
    %v569 = vtanh.pop %v567
    %v570 = vxor.u32 %v567, 2147483648
    %v571 = vmul.f32 %v570, 1.442695
    %v572 = vpow.pop %v571
    %v573 = vadd.f32 %v572, 1.0
    %v574 = vrcp.pop %v573
    %v575 = vmul.f32 %v573, %v574
    %v576 = vsub.f32 1.0, %v575
    %v577 = vmul.f32 %v574, %v576
    %v578 = vadd.f32 %v574, %v577
    %vm579 = vweird.f32 %v573
    %vm580 = vweird.f32 %v574
    %vm581 = vmor %vm579, %vm580
    %v582 = vsel %vm581, %v574, %v578
    %v583 = vand.u32 2147483647, %v573
    %vm584 = vcmp.eq.f32.partialorder %v583, 8.507059e+37
    %v585 = vand.u32 %v573, 2147483648
    %v586 = vor.u32 1.1754944e-38, %v585
    %v587 = vsel %vm584, %v586, %v582
    %v588 = vmul.f32 1.0, %v587
    %v589 = vsel %vm76, %v569, %v588
    %v590 = vmul.f32 %v589, %v467
    %592 = vrot.lane.b32.xlu0 %v589, 64
    %v593 = vpop.permute.xlu0 %592
    %v595 = vmul.f32 %v589, %v593
    %597 = vrot.lane.b32.xlu0 %v595, 32
    %v598 = vpop.permute.xlu0 %597
    %v600 = vadd.f32 %v590, %v598
    %v601 = vtanh.pop %v600
    %603 = vrot.lane.b32.xlu0 %v601, 64
    %v604 = vpop.permute.xlu0 %603
    %v606 = vmul.f32 %v589, %v604
    %s607 = scalar_lea.vmem %s0, 16
    %v608 = vld [vmem:[%s607] sm:$0xf]
    %v609 = vsel %vm78, %v539, 0
    %611 = vmatpush.msra.mxu0 0.0
    %612 = vmatpush.msra.mxu0 0.0
    %613 = vmatpush.msra.mxu0 0.0
    %614 = vmatpush.msra.mxu0 0.0
    %615 = vmatpush.msra.mxu0 0.0
    %616 = vmatpush.msra.mxu0 0.0
    %617 = vmatpush.msra.mxu0 0.0
    %618 = vmatpush.msra.mxu0 0.0
    %619 = vmatpush.msra.mxu0 0.0
    %620 = vmatpush.msra.mxu0 0.0
    %621 = vmatpush.msra.mxu0 0.0
    %622 = vmatpush.msra.mxu0 0.0
    %623 = vmatpush.msra.mxu0 %v59
    %624 = vmatpush.msra.mxu0 %v58
    %625 = vmatpush.msra.mxu0 %v57
    %626 = vmatpush.msra.mxu0 %v56
    %627 = vmatmul.f32.gmra.mxu0 %v609
    %v628 = vpop.f32.mrf.mxu0
    %v629 = vadd.f32 0.0, %v628
    %630 = vdwg.mxu0
    %v631 = vadd.f32 %v608, %v629
    %v632 = vtanh.pop %v631
    %v633 = vxor.u32 %v631, 2147483648
    %v634 = vmul.f32 %v633, 1.442695
    %v635 = vpow.pop %v634
    %v636 = vadd.f32 %v635, 1.0
    %v637 = vrcp.pop %v636
    %v638 = vmul.f32 %v636, %v637
    %v639 = vsub.f32 1.0, %v638
    %v640 = vmul.f32 %v637, %v639
    %v641 = vadd.f32 %v637, %v640
    %vm642 = vweird.f32 %v636
    %vm643 = vweird.f32 %v637
    %vm644 = vmor %vm642, %vm643
    %v645 = vsel %vm644, %v637, %v641
    %v646 = vand.u32 2147483647, %v636
    %vm647 = vcmp.eq.f32.partialorder %v646, 8.507059e+37
    %v648 = vand.u32 %v636, 2147483648
    %v649 = vor.u32 1.1754944e-38, %v648
    %v650 = vsel %vm647, %v649, %v645
    %v651 = vmul.f32 1.0, %v650
    %v652 = vsel %vm76, %v632, %v651
    %v653 = vmul.f32 %v652, %v530
    %655 = vrot.lane.b32.xlu0 %v652, 64
    %v656 = vpop.permute.xlu0 %655
    %v658 = vmul.f32 %v652, %v656
    %660 = vrot.lane.b32.xlu0 %v658, 32
    %v661 = vpop.permute.xlu0 %660
    %v663 = vadd.f32 %v653, %v661
    %v664 = vtanh.pop %v663
    %666 = vrot.lane.b32.xlu0 %v664, 64
    %v667 = vpop.permute.xlu0 %666
    %v669 = vmul.f32 %v652, %v667
    %671 = vrot.lane.b32.xlu0 %v669, 32
    %v672 = vpop.permute.xlu0 %671
    %675 = vrot.lane.b32.xlu0 %v606, 64
    %v676 = vpop.permute.xlu0 %675
    %v678 = vsel %vm78, %v672, %v676
    %v680 = vsel %vm146, %v678, 0
    %682 = vmatpush.msra.mxu0 0.0
    %683 = vmatpush.msra.mxu0 0.0
    %684 = vmatpush.msra.mxu0 0.0
    %685 = vmatpush.msra.mxu0 0.0
    %686 = vmatpush.msra.mxu0 0.0
    %687 = vmatpush.msra.mxu0 0.0
    %688 = vmatpush.msra.mxu0 0.0
    %689 = vmatpush.msra.mxu0 0.0
    %690 = vmatpush.msra.mxu0 %v67
    %691 = vmatpush.msra.mxu0 %v66
    %692 = vmatpush.msra.mxu0 %v65
    %693 = vmatpush.msra.mxu0 %v64
    %694 = vmatpush.msra.mxu0 %v63
    %695 = vmatpush.msra.mxu0 %v62
    %696 = vmatpush.msra.mxu0 %v61
    %697 = vmatpush.msra.mxu0 %v60
    %698 = vmatmul.f32.gmra.mxu0 %v680
    %v699 = vpop.f32.mrf.mxu0
    %v700 = vadd.f32 %v70, %v699
    %701 = vdwg.mxu0
    %v702 = vtanh.pop %v700
    %v703 = vxor.u32 %v700, 2147483648
    %v704 = vmul.f32 %v703, 1.442695
    %v705 = vpow.pop %v704
    %v706 = vadd.f32 %v705, 1.0
    %v707 = vrcp.pop %v706
    %v708 = vmul.f32 %v706, %v707
    %v709 = vsub.f32 1.0, %v708
    %v710 = vmul.f32 %v707, %v709
    %v711 = vadd.f32 %v707, %v710
    %vm712 = vweird.f32 %v706
    %vm713 = vweird.f32 %v707
    %vm714 = vmor %vm712, %vm713
    %v715 = vsel %vm714, %v707, %v711
    %v716 = vand.u32 2147483647, %v706
    %vm717 = vcmp.eq.f32.partialorder %v716, 8.507059e+37
    %v718 = vand.u32 %v706, 2147483648
    %v719 = vor.u32 1.1754944e-38, %v718
    %v720 = vsel %vm717, %v719, %v715
    %v721 = vmul.f32 1.0, %v720
    %v722 = vsel %vm76, %v702, %v721
    %v723 = vmul.f32 %v722, %v600
    %725 = vrot.lane.b32.xlu0 %v722, 64
    %v726 = vpop.permute.xlu0 %725
    %v728 = vmul.f32 %v722, %v726
    %730 = vrot.lane.b32.xlu0 %v728, 32
    %v731 = vpop.permute.xlu0 %730
    %v733 = vadd.f32 %v723, %v731
    %v734 = vtanh.pop %v733
    %736 = vrot.lane.b32.xlu0 %v734, 64
    %v737 = vpop.permute.xlu0 %736
    %v739 = vmul.f32 %v722, %v737
    %s740 = scalar_lea.vmem %s0, 20
    %v741 = vld [vmem:[%s740] sm:$0xf]
    %v742 = vsel %vm78, %v672, 0
    %744 = vmatpush.msra.mxu0 0.0
    %745 = vmatpush.msra.mxu0 0.0
    %746 = vmatpush.msra.mxu0 0.0
    %747 = vmatpush.msra.mxu0 0.0
    %748 = vmatpush.msra.mxu0 0.0
    %749 = vmatpush.msra.mxu0 0.0
    %750 = vmatpush.msra.mxu0 0.0
    %751 = vmatpush.msra.mxu0 0.0
    %752 = vmatpush.msra.mxu0 0.0
    %753 = vmatpush.msra.mxu0 0.0
    %754 = vmatpush.msra.mxu0 0.0
    %755 = vmatpush.msra.mxu0 0.0
    %756 = vmatpush.msra.mxu0 %v59
    %757 = vmatpush.msra.mxu0 %v58
    %758 = vmatpush.msra.mxu0 %v57
    %759 = vmatpush.msra.mxu0 %v56
    %760 = vmatmul.f32.gmra.mxu0 %v742
    %v761 = vpop.f32.mrf.mxu0
    %v762 = vadd.f32 0.0, %v761
    %763 = vdwg.mxu0
    %v764 = vadd.f32 %v741, %v762
    %v765 = vtanh.pop %v764
    %v766 = vxor.u32 %v764, 2147483648
    %v767 = vmul.f32 %v766, 1.442695
    %v768 = vpow.pop %v767
    %v769 = vadd.f32 %v768, 1.0
    %v770 = vrcp.pop %v769
    %v771 = vmul.f32 %v769, %v770
    %v772 = vsub.f32 1.0, %v771
    %v773 = vmul.f32 %v770, %v772
    %v774 = vadd.f32 %v770, %v773
    %vm775 = vweird.f32 %v769
    %vm776 = vweird.f32 %v770
    %vm777 = vmor %vm775, %vm776
    %v778 = vsel %vm777, %v770, %v774
    %v779 = vand.u32 2147483647, %v769
    %vm780 = vcmp.eq.f32.partialorder %v779, 8.507059e+37
    %v781 = vand.u32 %v769, 2147483648
    %v782 = vor.u32 1.1754944e-38, %v781
    %v783 = vsel %vm780, %v782, %v778
    %v784 = vmul.f32 1.0, %v783
    %v785 = vsel %vm76, %v765, %v784
    %v786 = vmul.f32 %v785, %v663
    %788 = vrot.lane.b32.xlu0 %v785, 64
    %v789 = vpop.permute.xlu0 %788
    %v791 = vmul.f32 %v785, %v789
    %793 = vrot.lane.b32.xlu0 %v791, 32
    %v794 = vpop.permute.xlu0 %793
    %v796 = vadd.f32 %v786, %v794
    %v797 = vtanh.pop %v796
    %799 = vrot.lane.b32.xlu0 %v797, 64
    %v800 = vpop.permute.xlu0 %799
    %v802 = vmul.f32 %v785, %v800
    %804 = vrot.lane.b32.xlu0 %v802, 32
    %v805 = vpop.permute.xlu0 %804
    %808 = vrot.lane.b32.xlu0 %v739, 64
    %v809 = vpop.permute.xlu0 %808
    %v811 = vsel %vm78, %v805, %v809
    %v813 = vsel %vm146, %v811, 0
    %815 = vmatpush.msra.mxu0 0.0
    %816 = vmatpush.msra.mxu0 0.0
    %817 = vmatpush.msra.mxu0 0.0
    %818 = vmatpush.msra.mxu0 0.0
    %819 = vmatpush.msra.mxu0 0.0
    %820 = vmatpush.msra.mxu0 0.0
    %821 = vmatpush.msra.mxu0 0.0
    %822 = vmatpush.msra.mxu0 0.0
    %823 = vmatpush.msra.mxu0 %v67
    %824 = vmatpush.msra.mxu0 %v66
    %825 = vmatpush.msra.mxu0 %v65
    %826 = vmatpush.msra.mxu0 %v64
    %827 = vmatpush.msra.mxu0 %v63
    %828 = vmatpush.msra.mxu0 %v62
    %829 = vmatpush.msra.mxu0 %v61
    %830 = vmatpush.msra.mxu0 %v60
    %831 = vmatmul.f32.gmra.mxu0 %v813
    %v832 = vpop.f32.mrf.mxu0
    %v833 = vadd.f32 %v70, %v832
    %834 = vdwg.mxu0
    %v835 = vtanh.pop %v833
    %v836 = vxor.u32 %v833, 2147483648
    %v837 = vmul.f32 %v836, 1.442695
    %v838 = vpow.pop %v837
    %v839 = vadd.f32 %v838, 1.0
    %v840 = vrcp.pop %v839
    %v841 = vmul.f32 %v839, %v840
    %v842 = vsub.f32 1.0, %v841
    %v843 = vmul.f32 %v840, %v842
    %v844 = vadd.f32 %v840, %v843
    %vm845 = vweird.f32 %v839
    %vm846 = vweird.f32 %v840
    %vm847 = vmor %vm845, %vm846
    %v848 = vsel %vm847, %v840, %v844
    %v849 = vand.u32 2147483647, %v839
    %vm850 = vcmp.eq.f32.partialorder %v849, 8.507059e+37
    %v851 = vand.u32 %v839, 2147483648
    %v852 = vor.u32 1.1754944e-38, %v851
    %v853 = vsel %vm850, %v852, %v848
    %v854 = vmul.f32 1.0, %v853
    %v855 = vsel %vm76, %v835, %v854
    %v856 = vmul.f32 %v855, %v733
    %858 = vrot.lane.b32.xlu0 %v855, 64
    %v859 = vpop.permute.xlu0 %858
    %v861 = vmul.f32 %v855, %v859
    %863 = vrot.lane.b32.xlu0 %v861, 32
    %v864 = vpop.permute.xlu0 %863
    %v866 = vadd.f32 %v856, %v864
    %v867 = vtanh.pop %v866
    %869 = vrot.lane.b32.xlu0 %v867, 64
    %v870 = vpop.permute.xlu0 %869
    %v872 = vmul.f32 %v855, %v870
    %s873 = scalar_lea.vmem %s0, 24
    %v874 = vld [vmem:[%s873] sm:$0xf]
    %v875 = vsel %vm78, %v805, 0
    %877 = vmatpush.msra.mxu0 0.0
    %878 = vmatpush.msra.mxu0 0.0
    %879 = vmatpush.msra.mxu0 0.0
    %880 = vmatpush.msra.mxu0 0.0
    %881 = vmatpush.msra.mxu0 0.0
    %882 = vmatpush.msra.mxu0 0.0
    %883 = vmatpush.msra.mxu0 0.0
    %884 = vmatpush.msra.mxu0 0.0
    %885 = vmatpush.msra.mxu0 0.0
    %886 = vmatpush.msra.mxu0 0.0
    %887 = vmatpush.msra.mxu0 0.0
    %888 = vmatpush.msra.mxu0 0.0
    %889 = vmatpush.msra.mxu0 %v59
    %890 = vmatpush.msra.mxu0 %v58
    %891 = vmatpush.msra.mxu0 %v57
    %892 = vmatpush.msra.mxu0 %v56
    %893 = vmatmul.f32.gmra.mxu0 %v875
    %v894 = vpop.f32.mrf.mxu0
    %v895 = vadd.f32 0.0, %v894
    %896 = vdwg.mxu0
    %v897 = vadd.f32 %v874, %v895
    %v898 = vtanh.pop %v897
    %v899 = vxor.u32 %v897, 2147483648
    %v900 = vmul.f32 %v899, 1.442695
    %v901 = vpow.pop %v900
    %v902 = vadd.f32 %v901, 1.0
    %v903 = vrcp.pop %v902
    %v904 = vmul.f32 %v902, %v903
    %v905 = vsub.f32 1.0, %v904
    %v906 = vmul.f32 %v903, %v905
    %v907 = vadd.f32 %v903, %v906
    %vm908 = vweird.f32 %v902
    %vm909 = vweird.f32 %v903
    %vm910 = vmor %vm908, %vm909
    %v911 = vsel %vm910, %v903, %v907
    %v912 = vand.u32 2147483647, %v902
    %vm913 = vcmp.eq.f32.partialorder %v912, 8.507059e+37
    %v914 = vand.u32 %v902, 2147483648
    %v915 = vor.u32 1.1754944e-38, %v914
    %v916 = vsel %vm913, %v915, %v911
    %v917 = vmul.f32 1.0, %v916
    %v918 = vsel %vm76, %v898, %v917
    %v919 = vmul.f32 %v918, %v796
    %921 = vrot.lane.b32.xlu0 %v918, 64
    %v922 = vpop.permute.xlu0 %921
    %v924 = vmul.f32 %v918, %v922
    %926 = vrot.lane.b32.xlu0 %v924, 32
    %v927 = vpop.permute.xlu0 %926
    %v929 = vadd.f32 %v919, %v927
    %v930 = vtanh.pop %v929
    %932 = vrot.lane.b32.xlu0 %v930, 64
    %v933 = vpop.permute.xlu0 %932
    %v935 = vmul.f32 %v918, %v933
    %937 = vrot.lane.b32.xlu0 %v935, 32
    %v938 = vpop.permute.xlu0 %937
    %941 = vrot.lane.b32.xlu0 %v872, 64
    %v942 = vpop.permute.xlu0 %941
    %v944 = vsel %vm78, %v938, %v942
    %v946 = vsel %vm146, %v944, 0
    %948 = vmatpush.msra.mxu0 0.0
    %949 = vmatpush.msra.mxu0 0.0
    %950 = vmatpush.msra.mxu0 0.0
    %951 = vmatpush.msra.mxu0 0.0
    %952 = vmatpush.msra.mxu0 0.0
    %953 = vmatpush.msra.mxu0 0.0
    %954 = vmatpush.msra.mxu0 0.0
    %955 = vmatpush.msra.mxu0 0.0
    %956 = vmatpush.msra.mxu0 %v67
    %957 = vmatpush.msra.mxu0 %v66
    %958 = vmatpush.msra.mxu0 %v65
    %959 = vmatpush.msra.mxu0 %v64
    %960 = vmatpush.msra.mxu0 %v63
    %961 = vmatpush.msra.mxu0 %v62
    %962 = vmatpush.msra.mxu0 %v61
    %963 = vmatpush.msra.mxu0 %v60
    %964 = vmatmul.f32.gmra.mxu0 %v946
    %v965 = vpop.f32.mrf.mxu0
    %v966 = vadd.f32 %v70, %v965
    %967 = vdwg.mxu0
    %v968 = vtanh.pop %v966
    %v969 = vxor.u32 %v966, 2147483648
    %v970 = vmul.f32 %v969, 1.442695
    %v971 = vpow.pop %v970
    %v972 = vadd.f32 %v971, 1.0
    %v973 = vrcp.pop %v972
    %v974 = vmul.f32 %v972, %v973
    %v975 = vsub.f32 1.0, %v974
    %v976 = vmul.f32 %v973, %v975
    %v977 = vadd.f32 %v973, %v976
    %vm978 = vweird.f32 %v972
    %vm979 = vweird.f32 %v973
    %vm980 = vmor %vm978, %vm979
    %v981 = vsel %vm980, %v973, %v977
    %v982 = vand.u32 2147483647, %v972
    %vm983 = vcmp.eq.f32.partialorder %v982, 8.507059e+37
    %v984 = vand.u32 %v972, 2147483648
    %v985 = vor.u32 1.1754944e-38, %v984
    %v986 = vsel %vm983, %v985, %v981
    %v987 = vmul.f32 1.0, %v986
    %v988 = vsel %vm76, %v968, %v987
    %v989 = vmul.f32 %v988, %v866
    %991 = vrot.lane.b32.xlu0 %v988, 64
    %v992 = vpop.permute.xlu0 %991
    %v994 = vmul.f32 %v988, %v992
    %996 = vrot.lane.b32.xlu0 %v994, 32
    %v997 = vpop.permute.xlu0 %996
    %v999 = vadd.f32 %v989, %v997
    %v1000 = vtanh.pop %v999
    %1002 = vrot.lane.b32.xlu0 %v1000, 64
    %v1003 = vpop.permute.xlu0 %1002
    %v1005 = vmul.f32 %v988, %v1003
    %s1006 = scalar_lea.vmem %s0, 28
    %v1007 = vld [vmem:[%s1006] sm:$0xf]
    %v1008 = vsel %vm78, %v938, 0
    %1010 = vmatpush.msra.mxu0 0.0
    %1011 = vmatpush.msra.mxu0 0.0
    %1012 = vmatpush.msra.mxu0 0.0
    %1013 = vmatpush.msra.mxu0 0.0
    %1014 = vmatpush.msra.mxu0 0.0
    %1015 = vmatpush.msra.mxu0 0.0
    %1016 = vmatpush.msra.mxu0 0.0
    %1017 = vmatpush.msra.mxu0 0.0
    %1018 = vmatpush.msra.mxu0 0.0
    %1019 = vmatpush.msra.mxu0 0.0
    %1020 = vmatpush.msra.mxu0 0.0
    %1021 = vmatpush.msra.mxu0 0.0
    %1022 = vmatpush.msra.mxu0 %v59
    %1023 = vmatpush.msra.mxu0 %v58
    %1024 = vmatpush.msra.mxu0 %v57
    %1025 = vmatpush.msra.mxu0 %v56
    %1026 = vmatmul.f32.gmra.mxu0 %v1008
    %v1027 = vpop.f32.mrf.mxu0
    %v1028 = vadd.f32 0.0, %v1027
    %1029 = vdwg.mxu0
    %v1030 = vadd.f32 %v1007, %v1028
    %v1031 = vtanh.pop %v1030
    %v1032 = vxor.u32 %v1030, 2147483648
    %v1033 = vmul.f32 %v1032, 1.442695
    %v1034 = vpow.pop %v1033
    %v1035 = vadd.f32 %v1034, 1.0
    %v1036 = vrcp.pop %v1035
    %v1037 = vmul.f32 %v1035, %v1036
    %v1038 = vsub.f32 1.0, %v1037
    %v1039 = vmul.f32 %v1036, %v1038
    %v1040 = vadd.f32 %v1036, %v1039
    %vm1041 = vweird.f32 %v1035
    %vm1042 = vweird.f32 %v1036
    %vm1043 = vmor %vm1041, %vm1042
    %v1044 = vsel %vm1043, %v1036, %v1040
    %v1045 = vand.u32 2147483647, %v1035
    %vm1046 = vcmp.eq.f32.partialorder %v1045, 8.507059e+37
    %v1047 = vand.u32 %v1035, 2147483648
    %v1048 = vor.u32 1.1754944e-38, %v1047
    %v1049 = vsel %vm1046, %v1048, %v1044
    %v1050 = vmul.f32 1.0, %v1049
    %v1051 = vsel %vm76, %v1031, %v1050
    %v1052 = vmul.f32 %v1051, %v929
    %1054 = vrot.lane.b32.xlu0 %v1051, 64
    %v1055 = vpop.permute.xlu0 %1054
    %v1057 = vmul.f32 %v1051, %v1055
    %1059 = vrot.lane.b32.xlu0 %v1057, 32
    %v1060 = vpop.permute.xlu0 %1059
    %v1062 = vadd.f32 %v1052, %v1060
    %v1063 = vtanh.pop %v1062
    %1065 = vrot.lane.b32.xlu0 %v1063, 64
    %v1066 = vpop.permute.xlu0 %1065
    %v1068 = vmul.f32 %v1051, %v1066
    %1070 = vrot.lane.b32.xlu0 %v1068, 32
    %v1071 = vpop.permute.xlu0 %1070
    %1074 = vrot.lane.b32.xlu0 %v1005, 64
    %v1075 = vpop.permute.xlu0 %1074
    %v1077 = vsel %vm78, %v1071, %v1075
    %v1079 = vsel %vm146, %v1077, 0
    %1081 = vmatpush.msra.mxu0 0.0
    %1082 = vmatpush.msra.mxu0 0.0
    %1083 = vmatpush.msra.mxu0 0.0
    %1084 = vmatpush.msra.mxu0 0.0
    %1085 = vmatpush.msra.mxu0 0.0
    %1086 = vmatpush.msra.mxu0 0.0
    %1087 = vmatpush.msra.mxu0 0.0
    %1088 = vmatpush.msra.mxu0 0.0
    %1089 = vmatpush.msra.mxu0 %v67
    %1090 = vmatpush.msra.mxu0 %v66
    %1091 = vmatpush.msra.mxu0 %v65
    %1092 = vmatpush.msra.mxu0 %v64
    %1093 = vmatpush.msra.mxu0 %v63
    %1094 = vmatpush.msra.mxu0 %v62
    %1095 = vmatpush.msra.mxu0 %v61
    %1096 = vmatpush.msra.mxu0 %v60
    %1097 = vmatmul.f32.gmra.mxu0 %v1079
    %v1098 = vpop.f32.mrf.mxu0
    %v1099 = vadd.f32 %v70, %v1098
    %1100 = vdwg.mxu0
    %v1101 = vtanh.pop %v1099
    %v1102 = vxor.u32 %v1099, 2147483648
    %v1103 = vmul.f32 %v1102, 1.442695
    %v1104 = vpow.pop %v1103
    %v1105 = vadd.f32 %v1104, 1.0
    %v1106 = vrcp.pop %v1105
    %v1107 = vmul.f32 %v1105, %v1106
    %v1108 = vsub.f32 1.0, %v1107
    %v1109 = vmul.f32 %v1106, %v1108
    %v1110 = vadd.f32 %v1106, %v1109
    %vm1111 = vweird.f32 %v1105
    %vm1112 = vweird.f32 %v1106
    %vm1113 = vmor %vm1111, %vm1112
    %v1114 = vsel %vm1113, %v1106, %v1110
    %v1115 = vand.u32 2147483647, %v1105
    %vm1116 = vcmp.eq.f32.partialorder %v1115, 8.507059e+37
    %v1117 = vand.u32 %v1105, 2147483648
    %v1118 = vor.u32 1.1754944e-38, %v1117
    %v1119 = vsel %vm1116, %v1118, %v1114
    %v1120 = vmul.f32 1.0, %v1119
    %v1121 = vsel %vm76, %v1101, %v1120
    %v1122 = vmul.f32 %v1121, %v999
    %1124 = vrot.lane.b32.xlu0 %v1121, 64
    %v1125 = vpop.permute.xlu0 %1124
    %v1127 = vmul.f32 %v1121, %v1125
    %1129 = vrot.lane.b32.xlu0 %v1127, 32
    %v1130 = vpop.permute.xlu0 %1129
    %v1132 = vadd.f32 %v1122, %v1130
    %v1133 = vtanh.pop %v1132
    %1135 = vrot.lane.b32.xlu0 %v1133, 64
    %v1136 = vpop.permute.xlu0 %1135
    %v1138 = vmul.f32 %v1121, %v1136
    %v1139 = vmax.f32 %v1138, 0.0
    %v1140 = vld [vmem:[%s4] sm:$0xff]
    %v1141 = vld [vmem:[%s4 + $0x8] sm:$0xff]
    %v1142 = vld [vmem:[%s4 + $0x10] sm:$0xff]
    %v1143 = vld [vmem:[%s4 + $0x18] sm:$0xff]
    %v1144 = vld [vmem:[%s5] sm:$0x1]
    %v1146 = vperm.slane %v1144, 0
    %1149 = vrot.lane.b32.xlu0 %v1139, 32
    %v1150 = vpop.permute.xlu0 %1149
    %v1151 = vsel %vm78, %v1150, 0
    %1153 = vmatpush.msra.mxu0 0.0
    %1154 = vmatpush.msra.mxu0 0.0
    %1155 = vmatpush.msra.mxu0 0.0
    %1156 = vmatpush.msra.mxu0 0.0
    %1157 = vmatpush.msra.mxu0 0.0
    %1158 = vmatpush.msra.mxu0 0.0
    %1159 = vmatpush.msra.mxu0 0.0
    %1160 = vmatpush.msra.mxu0 0.0
    %1161 = vmatpush.msra.mxu0 0.0
    %1162 = vmatpush.msra.mxu0 0.0
    %1163 = vmatpush.msra.mxu0 0.0
    %1164 = vmatpush.msra.mxu0 0.0
    %1165 = vmatpush.msra.mxu0 %v1143
    %1166 = vmatpush.msra.mxu0 %v1142
    %1167 = vmatpush.msra.mxu0 %v1141
    %1168 = vmatpush.msra.mxu0 %v1140
    %1169 = vmatmul.f32.gmra.mxu0 %v1151
    %v1170 = vpop.f32.mrf.mxu0
    %v1171 = vadd.f32 %v1146, %v1170
    %1172 = vdwg.mxu0
    %vm1173 = vcmask 19456
    %v1174 = vsel %vm1173, %v1171, -inf
    %1175 = vmax.xlane.f32.xlu0 %v1174
    %v1176 = vpop.xlane.xlu0 %1175
    %v1177 = vsub.f32 %v1171, %v1176
    %v1178 = vmul.f32 %v1177, 1.442695
    %v1179 = vpow.pop %v1178
    %v1180 = vsel %vm1173, %v1179, 0.0
    %1181 = vadd.xlane.f32.xlu0 %v1180
    %v1182 = vpop.xlane.xlu0 %1181
    %v1183 = vrcp.pop %v1182
    %v1184 = vmul.f32 %v1182, %v1183
    %v1185 = vsub.f32 1.0, %v1184
    %v1186 = vmul.f32 %v1183, %v1185
    %v1187 = vadd.f32 %v1183, %v1186
    %vm1188 = vweird.f32 %v1182
    %vm1189 = vweird.f32 %v1183
    %vm1190 = vmor %vm1188, %vm1189
    %v1191 = vsel %vm1190, %v1183, %v1187
    %v1192 = vand.u32 2147483647, %v1182
    %vm1193 = vcmp.eq.f32.partialorder %v1192, 8.507059e+37
    %v1194 = vand.u32 %v1182, 2147483648
    %v1195 = vor.u32 1.1754944e-38, %v1194
    %v1196 = vsel %vm1193, %v1195, %v1191
    %v1197 = vmul.f32 %v1179, %v1196
    %1198 = vst.msk [vmem:[#allocation7] sm:$0xf] %vm1173, %v1197
    // Predicated region
    $region34: #{tpu_custom_call.1} parent=1 // pred_check
      _
    $region35: #{tpu_custom_call.1} parent=1 // pred_check_branch
      %1200 = sbr.rel (0) target = $region37
    $region36: #{tpu_custom_call.1} parent=1 // pred_region
      %1202 = vsyncadd [#allocation4], 0
      %s1204 = sshll.u32 [#allocation7], 4
      %s1205 = int_to_ptr.vmem [resolvable:$true] %s1204
      %s1206 = sshll.u32 %s6, 4
      %s1207 = int_to_ptr.hbm [resolvable:$true] %s1206
      %1209 = dma.vmem_to_hbm [thread:$0]  %s1205, 64, %s1207, [#allocation4]
    $region37: #{tpu_custom_call.1} parent=1 // pred_fallthru
      _
    // Predicated region
    $region38: #{tpu_custom_call.1} parent=1 // pred_check
      _
    $region39: #{tpu_custom_call.1} parent=1 // pred_check_branch
      %1211 = sbr.rel (0) target = $region41
    $region40: #{tpu_custom_call.1} parent=1 // pred_region
      %1213 = dma.done [#allocation4], 64
    $region41: #{tpu_custom_call.1} parent=1 // pred_fallthru
      _
    %1214 = vsyncpa [#allocation3], 1
    %1215 = vsyncpa [#allocation6], 1
    %1216 = vsyncpa [#allocation4], 1

</llo_original>
